<compile_context>
chip_gen: v7x
topology: tpu7x:2x2x1
jax: 0.10.0
libtpu: 0.0.40
codegen_flags: <defaults>
</compile_context>

<pallas_src>
import functools

import jax
import jax.numpy as jnp
from jax.experimental import pallas as pl
from jax.experimental.pallas import tpu as pltpu

# ------------------------------- config -------------------------------------
BATCH     = 2
SEQ_N     = 8     # query sequence length (n)
SEQ_M     = 8     # key/value sequence length (m); y = x here so m == n
DIM_SELF  = 64    # c
DIM_REF   = 64    # dim of y; y = x -> equals DIM_SELF
NUM_HEADS = 4
HEAD_DIM  = DIM_SELF // NUM_HEADS


# ----------------------------- fused kernel ---------------------------------
def _mha_kernel(x_ref, y_ref, wq_ref, bq_ref, wkv_ref, bkv_ref,
                wp_ref, bp_ref, out_ref, attn_ref, *, num_heads, scale):
    """One batch element per grid step; all heads handled inside the step."""
    x = x_ref[0]                               # (n, c)
    y = y_ref[0]                               # (m, dim_ref)

    # to_queries / to_keys_values  (matmul + bias, f32 accumulation on MXU)
    q  = jnp.dot(x, wq_ref[...],  preferred_element_type=jnp.float32) + bq_ref[...]
    kv = jnp.dot(y, wkv_ref[...], preferred_element_type=jnp.float32) + bkv_ref[...]

    c = q.shape[-1]
    d = c // num_heads
    k = kv[:, :c]                              # keys   (m, c)  (dim-2 index 0)
    v = kv[:, c:]                              # values (m, c)  (dim-2 index 1)

    # Per-head attention; head split / merge stays inside the kernel.
    outs = []
    for h in range(num_heads):
        sl = slice(h * d, (h + 1) * d)
        qh, kh, vh = q[:, sl], k[:, sl], v[:, sl]          # (n,d) (m,d) (m,d)
        # scores = qh @ kh^T  (contract on head_dim, no explicit transpose)
        s = jax.lax.dot_general(qh, kh, (((1,), (1,)), ((), ())),
                                preferred_element_type=jnp.float32) * scale  # (n,m)
        s = s - jnp.max(s, axis=-1, keepdims=True)
        p = jnp.exp(s)
        p = p * pl.reciprocal(jnp.sum(p, axis=-1, keepdims=True), approx=False)
        attn_ref[0, h] = p                                 # (n, m)
        outs.append(jnp.dot(p, vh, preferred_element_type=jnp.float32))  # (n, d)
    o = jnp.concatenate(outs, axis=-1)                     # (n, c), head-major

    # output projection (lane-dense (n, c) store)
    out_ref[0] = (jnp.dot(o, wp_ref[...], preferred_element_type=jnp.float32)
                  + bp_ref[...])


# -------------------------------- wrapper ------------------------------------
def multi_head_attention(x, y, params, num_heads):
    """x: (B, n, c) f32, y: (B, m, dim_ref) f32 -> (out (B,n,c), attn (B,n,m,H))."""
    B, n, c = x.shape
    _, m, dr = y.shape
    d = c // num_heads
    kernel = functools.partial(_mha_kernel, num_heads=num_heads,
                               scale=float(d) ** -0.5)

    out, attn_h_first = pl.pallas_call(
        kernel,
        out_shape=(jax.ShapeDtypeStruct((B, n, c), jnp.float32),
                   jax.ShapeDtypeStruct((B, num_heads, n, m), jnp.float32)),
        grid=(B,),
        in_specs=[
            pl.BlockSpec((1, n, c),  lambda b: (b, 0, 0)),     # x
            pl.BlockSpec((1, m, dr), lambda b: (b, 0, 0)),     # y
            pl.BlockSpec((dr if dr == c else c, c), lambda b: (0, 0)) if False else
            pl.BlockSpec((c, c),        lambda b: (0, 0)),     # Wq  (c, c)
            pl.BlockSpec((1, c),        lambda b: (0, 0)),     # bq
            pl.BlockSpec((dr, 2 * c),   lambda b: (0, 0)),     # Wkv (dr, 2c)
            pl.BlockSpec((1, 2 * c),    lambda b: (0, 0)),     # bkv
            pl.BlockSpec((c, c),        lambda b: (0, 0)),     # Wp  (c, c)
            pl.BlockSpec((1, c),        lambda b: (0, 0)),     # bp
        ],
        out_specs=(
            pl.BlockSpec((1, n, c),              lambda b: (b, 0, 0)),
            pl.BlockSpec((1, num_heads, n, m),   lambda b: (b, 0, 0, 0)),
        ),
        compiler_params=pltpu.CompilerParams(
            dimension_semantics=("parallel",)),
    )(x, y,
      params["wq"],  params["bq"].reshape(1, c),
      params["wkv"], params["bkv"].reshape(1, 2 * c),
      params["wp"],  params["bp"].reshape(1, c))

    # PyTorch returns attention as (b, n, m, h); transpose is cheap XLA glue.
    return out, attn_h_first.transpose(0, 2, 3, 1)


# --------------------------- pure-JAX reference -------------------------------
def mha_reference(x, y, params, num_heads):
    b, n, c = x.shape
    _, m, _ = y.shape
    d = c // num_heads
    hp = jax.lax.Precision.HIGHEST
    q = (x @ params["wq"] + params["bq"]).reshape(b, n, num_heads, d)
    kv = (y @ params["wkv"] + params["bkv"]).reshape(b, m, 2, num_heads, d)
    k, v = kv[:, :, 0], kv[:, :, 1]
    attn = jnp.einsum('bnhd,bmhd->bnmh', q, k, precision=hp) * (float(d) ** -0.5)
    attn = jax.nn.softmax(attn, axis=2)
    out = jnp.einsum('bnmh,bmhd->bnhd', attn, v, precision=hp).reshape(b, n, c)
    out = out @ params["wp"] + params["bp"]
    return out, attn


# ---------------------------------- main -------------------------------------
if __name__ == "__main__":
    key = jax.random.PRNGKey(0)
    kx, kq, kb1, kkv, kb2, kp, kb3 = jax.random.split(key, 7)

    x = jax.random.normal(kx, (BATCH, SEQ_N, DIM_SELF), dtype=jnp.float32)
    params = {
        "wq":  (0.1 * jax.random.normal(kq,  (DIM_SELF, DIM_SELF))).astype(jnp.float32),
        "bq":  (0.01 * jax.random.normal(kb1, (DIM_SELF,))).astype(jnp.float32),
        "wkv": (0.1 * jax.random.normal(kkv, (DIM_REF, 2 * DIM_SELF))).astype(jnp.float32),
        "bkv": (0.01 * jax.random.normal(kb2, (2 * DIM_SELF,))).astype(jnp.float32),
        "wp":  (0.1 * jax.random.normal(kp,  (DIM_SELF, DIM_SELF))).astype(jnp.float32),
        "bp":  (0.01 * jax.random.normal(kb3, (DIM_SELF,))).astype(jnp.float32),
    }

    fwd = jax.jit(functools.partial(multi_head_attention, num_heads=NUM_HEADS))
    out, attn = fwd(x, x, params)          # y = None -> y = x (self-attention)
    jax.block_until_ready((out, attn))

    ref_out, ref_attn = mha_reference(x, x, params, NUM_HEADS)

    assert out.shape == (BATCH, SEQ_N, DIM_SELF)
    assert attn.shape == (BATCH, SEQ_N, SEQ_M, NUM_HEADS)
    assert bool(jnp.all(jnp.isfinite(out))) and bool(jnp.all(jnp.isfinite(attn)))
    assert bool(jnp.allclose(out,  ref_out,  atol=2e-2, rtol=2e-2))
    assert bool(jnp.allclose(attn, ref_attn, atol=2e-2, rtol=2e-2))
    print("KERNEL_OK")
</pallas_src>

<mosaic_0001>
module attributes {stable_mosaic.version = 11 : i64} {
  func.func @_mha_kernel(%arg0: i32, %arg1: memref<1x8x64xf32, #tpu.memory_space<vmem>>, %arg2: memref<1x8x64xf32, #tpu.memory_space<vmem>>, %arg3: memref<64x64xf32, #tpu.memory_space<vmem>>, %arg4: memref<1x64xf32, #tpu.memory_space<vmem>>, %arg5: memref<64x128xf32, #tpu.memory_space<vmem>>, %arg6: memref<1x128xf32, #tpu.memory_space<vmem>>, %arg7: memref<64x64xf32, #tpu.memory_space<vmem>>, %arg8: memref<1x64xf32, #tpu.memory_space<vmem>>, %arg9: memref<1x8x64xf32, #tpu.memory_space<vmem>>, %arg10: memref<1x4x8x8xf32, #tpu.memory_space<vmem>>) attributes {dimension_semantics = [#tpu.dimension_semantics<parallel>], iteration_bounds = array<i64: 2>, scalar_prefetch = 0 : i64, scratch_operands = 0 : i64, tpu.core_type = #tpu.core_type<tc>, window_params = [{transform_indices = @transform_0, window_bounds = array<i64: 1, 8, 64>}, {transform_indices = @transform_1, window_bounds = array<i64: 1, 8, 64>}, {pipeline_mode = #tpu.pipeline_mode<synchronous>, transform_indices = @transform_2, window_bounds = array<i64: 64, 64>}, {pipeline_mode = #tpu.pipeline_mode<synchronous>, transform_indices = @transform_3, window_bounds = array<i64: 1, 64>}, {pipeline_mode = #tpu.pipeline_mode<synchronous>, transform_indices = @transform_4, window_bounds = array<i64: 64, 128>}, {pipeline_mode = #tpu.pipeline_mode<synchronous>, transform_indices = @transform_5, window_bounds = array<i64: 1, 128>}, {pipeline_mode = #tpu.pipeline_mode<synchronous>, transform_indices = @transform_6, window_bounds = array<i64: 64, 64>}, {pipeline_mode = #tpu.pipeline_mode<synchronous>, transform_indices = @transform_7, window_bounds = array<i64: 1, 64>}, {transform_indices = @transform_8, window_bounds = array<i64: 1, 8, 64>}, {transform_indices = @transform_9, window_bounds = array<i64: 1, 4, 8, 8>}]} {
    %c0 = arith.constant 0 : index
    %c0_0 = arith.constant 0 : index
    %c0_1 = arith.constant 0 : index
    %0 = vector.load %arg1[%c0, %c0_0, %c0_1] : memref<1x8x64xf32, #tpu.memory_space<vmem>>, vector<1x8x64xf32>
    %1 = vector.shape_cast %0 : vector<1x8x64xf32> to vector<8x64xf32>
    %c0_2 = arith.constant 0 : index
    %c0_3 = arith.constant 0 : index
    %c0_4 = arith.constant 0 : index
    %2 = vector.load %arg2[%c0_2, %c0_3, %c0_4] : memref<1x8x64xf32, #tpu.memory_space<vmem>>, vector<1x8x64xf32>
    %3 = vector.shape_cast %2 : vector<1x8x64xf32> to vector<8x64xf32>
    %c0_5 = arith.constant 0 : index
    %c0_6 = arith.constant 0 : index
    %4 = vector.load %arg3[%c0_5, %c0_6] : memref<64x64xf32, #tpu.memory_space<vmem>>, vector<64x64xf32>
    %cst = arith.constant dense<0.000000e+00> : vector<8x64xf32>
    %5 = tpu.matmul %1, %4, %cst {dimension_numbers = #tpu.dot_dimension_numbers<[1], [0], [0], [1], [0, 0, 1, 1], [], []>} : vector<8x64xf32>, vector<64x64xf32>, vector<8x64xf32> -> vector<8x64xf32>
    %c0_7 = arith.constant 0 : index
    %c0_8 = arith.constant 0 : index
    %6 = vector.load %arg4[%c0_7, %c0_8] : memref<1x64xf32, #tpu.memory_space<vmem>>, vector<1x64xf32>
    %7 = vector.broadcast %6 : vector<1x64xf32> to vector<8x64xf32>
    %8 = arith.addf %5, %7 : vector<8x64xf32>
    %c0_9 = arith.constant 0 : index
    %c0_10 = arith.constant 0 : index
    %9 = vector.load %arg5[%c0_9, %c0_10] : memref<64x128xf32, #tpu.memory_space<vmem>>, vector<64x128xf32>
    %cst_11 = arith.constant dense<0.000000e+00> : vector<8x128xf32>
    %10 = tpu.matmul %3, %9, %cst_11 {dimension_numbers = #tpu.dot_dimension_numbers<[1], [0], [0], [1], [0, 0, 1, 1], [], []>} : vector<8x64xf32>, vector<64x128xf32>, vector<8x128xf32> -> vector<8x128xf32>
    %c0_12 = arith.constant 0 : index
    %c0_13 = arith.constant 0 : index
    %11 = vector.load %arg6[%c0_12, %c0_13] : memref<1x128xf32, #tpu.memory_space<vmem>>, vector<1x128xf32>
    %12 = vector.broadcast %11 : vector<1x128xf32> to vector<8x128xf32>
    %13 = arith.addf %10, %12 : vector<8x128xf32>
    %14 = vector.extract_strided_slice %13 {offsets = [0, 0], sizes = [8, 64], strides = [1, 1]} : vector<8x128xf32> to vector<8x64xf32>
    %15 = vector.extract_strided_slice %13 {offsets = [0, 64], sizes = [8, 64], strides = [1, 1]} : vector<8x128xf32> to vector<8x64xf32>
    %16 = vector.extract_strided_slice %8 {offsets = [0, 0], sizes = [8, 16], strides = [1, 1]} : vector<8x64xf32> to vector<8x16xf32>
    %17 = vector.extract_strided_slice %14 {offsets = [0, 0], sizes = [8, 16], strides = [1, 1]} : vector<8x64xf32> to vector<8x16xf32>
    %18 = vector.extract_strided_slice %15 {offsets = [0, 0], sizes = [8, 16], strides = [1, 1]} : vector<8x64xf32> to vector<8x16xf32>
    %cst_14 = arith.constant dense<0.000000e+00> : vector<8x8xf32>
    %19 = tpu.matmul %16, %17, %cst_14 {dimension_numbers = #tpu.dot_dimension_numbers<[1], [1], [0], [0], [0, 0, 1, 0], [], []>} : vector<8x16xf32>, vector<8x16xf32>, vector<8x8xf32> -> vector<8x8xf32>
    %cst_15 = arith.constant 2.500000e-01 : f32
    %20 = vector.broadcast %cst_15 : f32 to vector<8x8xf32>
    %21 = arith.mulf %19, %20 : vector<8x8xf32>
    %cst_16 = arith.constant dense<0xFF800000> : vector<8xf32>
    %22 = vector.multi_reduction <maximumf>, %21, %cst_16 [1] : vector<8x8xf32> to vector<8xf32>
    %23 = vector.shape_cast %22 : vector<8xf32> to vector<8x1xf32>
    %24 = vector.broadcast %23 : vector<8x1xf32> to vector<8x8xf32>
    %25 = arith.subf %21, %24 : vector<8x8xf32>
    %26 = math.exp %25 : vector<8x8xf32>
    %cst_17 = arith.constant dense<0.000000e+00> : vector<8xf32>
    %27 = vector.multi_reduction <add>, %26, %cst_17 [1] : vector<8x8xf32> to vector<8xf32>
    %28 = vector.shape_cast %27 : vector<8xf32> to vector<8x1xf32>
    %29 = tpu.reciprocal %28 : vector<8x1xf32> -> vector<8x1xf32>
    %30 = vector.broadcast %29 : vector<8x1xf32> to vector<8x8xf32>
    %31 = arith.mulf %26, %30 : vector<8x8xf32>
    %c0_18 = arith.constant 0 : index
    %c0_19 = arith.constant 0 : index
    %c0_20 = arith.constant 0 : index
    %c0_21 = arith.constant 0 : index
    %32 = vector.load %arg10[%c0_18, %c0_19, %c0_20, %c0_21] : memref<1x4x8x8xf32, #tpu.memory_space<vmem>>, vector<1x1x8x8xf32>
    %33 = vector.shape_cast %32 : vector<1x1x8x8xf32> to vector<8x8xf32>
    %34 = vector.shape_cast %31 : vector<8x8xf32> to vector<1x1x8x8xf32>
    tpu.vector_store %arg10[%c0_18, %c0_19, %c0_20, %c0_21], %34 {strides = array<i32>} : memref<1x4x8x8xf32, #tpu.memory_space<vmem>>, vector<1x1x8x8xf32>,
    %cst_22 = arith.constant dense<0.000000e+00> : vector<8x16xf32>
    %35 = tpu.matmul %31, %18, %cst_22 {dimension_numbers = #tpu.dot_dimension_numbers<[1], [0], [0], [1], [0, 0, 1, 1], [], []>} : vector<8x8xf32>, vector<8x16xf32>, vector<8x16xf32> -> vector<8x16xf32>
    %36 = vector.extract_strided_slice %8 {offsets = [0, 16], sizes = [8, 16], strides = [1, 1]} : vector<8x64xf32> to vector<8x16xf32>
    %37 = vector.extract_strided_slice %14 {offsets = [0, 16], sizes = [8, 16], strides = [1, 1]} : vector<8x64xf32> to vector<8x16xf32>
    %38 = vector.extract_strided_slice %15 {offsets = [0, 16], sizes = [8, 16], strides = [1, 1]} : vector<8x64xf32> to vector<8x16xf32>
    %cst_23 = arith.constant dense<0.000000e+00> : vector<8x8xf32>
    %39 = tpu.matmul %36, %37, %cst_23 {dimension_numbers = #tpu.dot_dimension_numbers<[1], [1], [0], [0], [0, 0, 1, 0], [], []>} : vector<8x16xf32>, vector<8x16xf32>, vector<8x8xf32> -> vector<8x8xf32>
    %cst_24 = arith.constant 2.500000e-01 : f32
    %40 = vector.broadcast %cst_24 : f32 to vector<8x8xf32>
    %41 = arith.mulf %39, %40 : vector<8x8xf32>
    %cst_25 = arith.constant dense<0xFF800000> : vector<8xf32>
    %42 = vector.multi_reduction <maximumf>, %41, %cst_25 [1] : vector<8x8xf32> to vector<8xf32>
    %43 = vector.shape_cast %42 : vector<8xf32> to vector<8x1xf32>
    %44 = vector.broadcast %43 : vector<8x1xf32> to vector<8x8xf32>
    %45 = arith.subf %41, %44 : vector<8x8xf32>
    %46 = math.exp %45 : vector<8x8xf32>
    %cst_26 = arith.constant dense<0.000000e+00> : vector<8xf32>
    %47 = vector.multi_reduction <add>, %46, %cst_26 [1] : vector<8x8xf32> to vector<8xf32>
    %48 = vector.shape_cast %47 : vector<8xf32> to vector<8x1xf32>
    %49 = tpu.reciprocal %48 : vector<8x1xf32> -> vector<8x1xf32>
    %50 = vector.broadcast %49 : vector<8x1xf32> to vector<8x8xf32>
    %51 = arith.mulf %46, %50 : vector<8x8xf32>
    %c0_27 = arith.constant 0 : index
    %c1 = arith.constant 1 : index
    %c0_28 = arith.constant 0 : index
    %c0_29 = arith.constant 0 : index
    %52 = vector.load %arg10[%c0_27, %c1, %c0_28, %c0_29] : memref<1x4x8x8xf32, #tpu.memory_space<vmem>>, vector<1x1x8x8xf32>
    %53 = vector.shape_cast %52 : vector<1x1x8x8xf32> to vector<8x8xf32>
    %54 = vector.shape_cast %51 : vector<8x8xf32> to vector<1x1x8x8xf32>
    tpu.vector_store %arg10[%c0_27, %c1, %c0_28, %c0_29], %54 {strides = array<i32>} : memref<1x4x8x8xf32, #tpu.memory_space<vmem>>, vector<1x1x8x8xf32>,
    %cst_30 = arith.constant dense<0.000000e+00> : vector<8x16xf32>
    %55 = tpu.matmul %51, %38, %cst_30 {dimension_numbers = #tpu.dot_dimension_numbers<[1], [0], [0], [1], [0, 0, 1, 1], [], []>} : vector<8x8xf32>, vector<8x16xf32>, vector<8x16xf32> -> vector<8x16xf32>
    %56 = vector.extract_strided_slice %8 {offsets = [0, 32], sizes = [8, 16], strides = [1, 1]} : vector<8x64xf32> to vector<8x16xf32>
    %57 = vector.extract_strided_slice %14 {offsets = [0, 32], sizes = [8, 16], strides = [1, 1]} : vector<8x64xf32> to vector<8x16xf32>
    %58 = vector.extract_strided_slice %15 {offsets = [0, 32], sizes = [8, 16], strides = [1, 1]} : vector<8x64xf32> to vector<8x16xf32>
    %cst_31 = arith.constant dense<0.000000e+00> : vector<8x8xf32>
    %59 = tpu.matmul %56, %57, %cst_31 {dimension_numbers = #tpu.dot_dimension_numbers<[1], [1], [0], [0], [0, 0, 1, 0], [], []>} : vector<8x16xf32>, vector<8x16xf32>, vector<8x8xf32> -> vector<8x8xf32>
    %cst_32 = arith.constant 2.500000e-01 : f32
    %60 = vector.broadcast %cst_32 : f32 to vector<8x8xf32>
    %61 = arith.mulf %59, %60 : vector<8x8xf32>
    %cst_33 = arith.constant dense<0xFF800000> : vector<8xf32>
    %62 = vector.multi_reduction <maximumf>, %61, %cst_33 [1] : vector<8x8xf32> to vector<8xf32>
    %63 = vector.shape_cast %62 : vector<8xf32> to vector<8x1xf32>
    %64 = vector.broadcast %63 : vector<8x1xf32> to vector<8x8xf32>
    %65 = arith.subf %61, %64 : vector<8x8xf32>
    %66 = math.exp %65 : vector<8x8xf32>
    %cst_34 = arith.constant dense<0.000000e+00> : vector<8xf32>
    %67 = vector.multi_reduction <add>, %66, %cst_34 [1] : vector<8x8xf32> to vector<8xf32>
    %68 = vector.shape_cast %67 : vector<8xf32> to vector<8x1xf32>
    %69 = tpu.reciprocal %68 : vector<8x1xf32> -> vector<8x1xf32>
    %70 = vector.broadcast %69 : vector<8x1xf32> to vector<8x8xf32>
    %71 = arith.mulf %66, %70 : vector<8x8xf32>
    %c0_35 = arith.constant 0 : index
    %c2 = arith.constant 2 : index
    %c0_36 = arith.constant 0 : index
    %c0_37 = arith.constant 0 : index
    %72 = vector.load %arg10[%c0_35, %c2, %c0_36, %c0_37] : memref<1x4x8x8xf32, #tpu.memory_space<vmem>>, vector<1x1x8x8xf32>
    %73 = vector.shape_cast %72 : vector<1x1x8x8xf32> to vector<8x8xf32>
    %74 = vector.shape_cast %71 : vector<8x8xf32> to vector<1x1x8x8xf32>
    tpu.vector_store %arg10[%c0_35, %c2, %c0_36, %c0_37], %74 {strides = array<i32>} : memref<1x4x8x8xf32, #tpu.memory_space<vmem>>, vector<1x1x8x8xf32>,
    %cst_38 = arith.constant dense<0.000000e+00> : vector<8x16xf32>
    %75 = tpu.matmul %71, %58, %cst_38 {dimension_numbers = #tpu.dot_dimension_numbers<[1], [0], [0], [1], [0, 0, 1, 1], [], []>} : vector<8x8xf32>, vector<8x16xf32>, vector<8x16xf32> -> vector<8x16xf32>
    %76 = vector.extract_strided_slice %8 {offsets = [0, 48], sizes = [8, 16], strides = [1, 1]} : vector<8x64xf32> to vector<8x16xf32>
    %77 = vector.extract_strided_slice %14 {offsets = [0, 48], sizes = [8, 16], strides = [1, 1]} : vector<8x64xf32> to vector<8x16xf32>
    %78 = vector.extract_strided_slice %15 {offsets = [0, 48], sizes = [8, 16], strides = [1, 1]} : vector<8x64xf32> to vector<8x16xf32>
    %cst_39 = arith.constant dense<0.000000e+00> : vector<8x8xf32>
    %79 = tpu.matmul %76, %77, %cst_39 {dimension_numbers = #tpu.dot_dimension_numbers<[1], [1], [0], [0], [0, 0, 1, 0], [], []>} : vector<8x16xf32>, vector<8x16xf32>, vector<8x8xf32> -> vector<8x8xf32>
    %cst_40 = arith.constant 2.500000e-01 : f32
    %80 = vector.broadcast %cst_40 : f32 to vector<8x8xf32>
    %81 = arith.mulf %79, %80 : vector<8x8xf32>
    %cst_41 = arith.constant dense<0xFF800000> : vector<8xf32>
    %82 = vector.multi_reduction <maximumf>, %81, %cst_41 [1] : vector<8x8xf32> to vector<8xf32>
    %83 = vector.shape_cast %82 : vector<8xf32> to vector<8x1xf32>
    %84 = vector.broadcast %83 : vector<8x1xf32> to vector<8x8xf32>
    %85 = arith.subf %81, %84 : vector<8x8xf32>
    %86 = math.exp %85 : vector<8x8xf32>
    %cst_42 = arith.constant dense<0.000000e+00> : vector<8xf32>
    %87 = vector.multi_reduction <add>, %86, %cst_42 [1] : vector<8x8xf32> to vector<8xf32>
    %88 = vector.shape_cast %87 : vector<8xf32> to vector<8x1xf32>
    %89 = tpu.reciprocal %88 : vector<8x1xf32> -> vector<8x1xf32>
    %90 = vector.broadcast %89 : vector<8x1xf32> to vector<8x8xf32>
    %91 = arith.mulf %86, %90 : vector<8x8xf32>
    %c0_43 = arith.constant 0 : index
    %c3 = arith.constant 3 : index
    %c0_44 = arith.constant 0 : index
    %c0_45 = arith.constant 0 : index
    %92 = vector.load %arg10[%c0_43, %c3, %c0_44, %c0_45] : memref<1x4x8x8xf32, #tpu.memory_space<vmem>>, vector<1x1x8x8xf32>
    %93 = vector.shape_cast %92 : vector<1x1x8x8xf32> to vector<8x8xf32>
    %94 = vector.shape_cast %91 : vector<8x8xf32> to vector<1x1x8x8xf32>
    tpu.vector_store %arg10[%c0_43, %c3, %c0_44, %c0_45], %94 {strides = array<i32>} : memref<1x4x8x8xf32, #tpu.memory_space<vmem>>, vector<1x1x8x8xf32>,
    %cst_46 = arith.constant dense<0.000000e+00> : vector<8x16xf32>
    %95 = tpu.matmul %91, %78, %cst_46 {dimension_numbers = #tpu.dot_dimension_numbers<[1], [0], [0], [1], [0, 0, 1, 1], [], []>} : vector<8x8xf32>, vector<8x16xf32>, vector<8x16xf32> -> vector<8x16xf32>
    %96 = tpu.concatenate %35, %55, %75, %95 in 1 : vector<8x16xf32>, vector<8x16xf32>, vector<8x16xf32>, vector<8x16xf32> -> vector<8x64xf32>
    %c0_47 = arith.constant 0 : index
    %c0_48 = arith.constant 0 : index
    %97 = vector.load %arg7[%c0_47, %c0_48] : memref<64x64xf32, #tpu.memory_space<vmem>>, vector<64x64xf32>
    %cst_49 = arith.constant dense<0.000000e+00> : vector<8x64xf32>
    %98 = tpu.matmul %96, %97, %cst_49 {dimension_numbers = #tpu.dot_dimension_numbers<[1], [0], [0], [1], [0, 0, 1, 1], [], []>} : vector<8x64xf32>, vector<64x64xf32>, vector<8x64xf32> -> vector<8x64xf32>
    %c0_50 = arith.constant 0 : index
    %c0_51 = arith.constant 0 : index
    %99 = vector.load %arg8[%c0_50, %c0_51] : memref<1x64xf32, #tpu.memory_space<vmem>>, vector<1x64xf32>
    %100 = vector.broadcast %99 : vector<1x64xf32> to vector<8x64xf32>
    %101 = arith.addf %98, %100 : vector<8x64xf32>
    %c0_52 = arith.constant 0 : index
    %c0_53 = arith.constant 0 : index
    %c0_54 = arith.constant 0 : index
    %102 = vector.load %arg9[%c0_52, %c0_53, %c0_54] : memref<1x8x64xf32, #tpu.memory_space<vmem>>, vector<1x8x64xf32>
    %103 = vector.shape_cast %102 : vector<1x8x64xf32> to vector<8x64xf32>
    %104 = vector.shape_cast %101 : vector<8x64xf32> to vector<1x8x64xf32>
    tpu.vector_store %arg9[%c0_52, %c0_53, %c0_54], %104 {strides = array<i32>} : memref<1x8x64xf32, #tpu.memory_space<vmem>>, vector<1x8x64xf32>,
    return
  }
  func.func @transform_0(%arg0: i32) -> (i32, i32, i32) {
    %c0_i32 = arith.constant 0 : i32
    %c0_i32_0 = arith.constant 0 : i32
    %c0_i32_1 = arith.constant 0 : i32
    return %arg0, %c0_i32, %c0_i32_0 : i32, i32, i32
  }
  func.func @transform_1(%arg0: i32) -> (i32, i32, i32) {
    %c0_i32 = arith.constant 0 : i32
    %c0_i32_0 = arith.constant 0 : i32
    %c0_i32_1 = arith.constant 0 : i32
    return %arg0, %c0_i32, %c0_i32_0 : i32, i32, i32
  }
  func.func @transform_2(%arg0: i32) -> (i32, i32) {
    %c0_i32 = arith.constant 0 : i32
    %c0_i32_0 = arith.constant 0 : i32
    %c0_i32_1 = arith.constant 0 : i32
    return %c0_i32, %c0_i32_0 : i32, i32
  }
  func.func @transform_3(%arg0: i32) -> (i32, i32) {
    %c0_i32 = arith.constant 0 : i32
    %c0_i32_0 = arith.constant 0 : i32
    %c0_i32_1 = arith.constant 0 : i32
    return %c0_i32, %c0_i32_0 : i32, i32
  }
  func.func @transform_4(%arg0: i32) -> (i32, i32) {
    %c0_i32 = arith.constant 0 : i32
    %c0_i32_0 = arith.constant 0 : i32
    %c0_i32_1 = arith.constant 0 : i32
    return %c0_i32, %c0_i32_0 : i32, i32
  }
  func.func @transform_5(%arg0: i32) -> (i32, i32) {
    %c0_i32 = arith.constant 0 : i32
    %c0_i32_0 = arith.constant 0 : i32
    %c0_i32_1 = arith.constant 0 : i32
    return %c0_i32, %c0_i32_0 : i32, i32
  }
  func.func @transform_6(%arg0: i32) -> (i32, i32) {
    %c0_i32 = arith.constant 0 : i32
    %c0_i32_0 = arith.constant 0 : i32
    %c0_i32_1 = arith.constant 0 : i32
    return %c0_i32, %c0_i32_0 : i32, i32
  }
  func.func @transform_7(%arg0: i32) -> (i32, i32) {
    %c0_i32 = arith.constant 0 : i32
    %c0_i32_0 = arith.constant 0 : i32
    %c0_i32_1 = arith.constant 0 : i32
    return %c0_i32, %c0_i32_0 : i32, i32
  }
  func.func @transform_8(%arg0: i32) -> (i32, i32, i32) {
    %c0_i32 = arith.constant 0 : i32
    %c0_i32_0 = arith.constant 0 : i32
    %c0_i32_1 = arith.constant 0 : i32
    return %arg0, %c0_i32, %c0_i32_0 : i32, i32, i32
  }
  func.func @transform_9(%arg0: i32) -> (i32, i32, i32, i32) {
    %c0_i32 = arith.constant 0 : i32
    %c0_i32_0 = arith.constant 0 : i32
    %c0_i32_1 = arith.constant 0 : i32
    %c0_i32_2 = arith.constant 0 : i32
    return %arg0, %c0_i32, %c0_i32_0, %c0_i32_1 : i32, i32, i32, i32
  }
}

</mosaic_0001>

<llo_original>
// kernel: multi_head_attention.1
$region0: #{multi_head_attention.1}
  #allocation0 [shape = 'u32[]', space=smem, size = 0x4, offset = 0x4, fixed_abs, tag = 'smem constant byte address 0x4 - core index']
  #allocation1 [shape = 'u32[144,128]{1,0:T(1,128)}', space=vmem, size = 0x12000, scoped, tag = 'internal scratch']
  %s0 = inlined_call_operand.hbm [shape: f32[2,8,64], index: 0, kind: input, shape index: {}]
  %s1 = inlined_call_operand.hbm [shape: f32[2,8,64], index: 1, kind: input, shape index: {}]
  %s2 = inlined_call_operand.hbm [shape: f32[64,64], index: 2, kind: input, shape index: {}]
  %s3 = inlined_call_operand.vmem [shape: f32[1,64], index: 3, kind: input, shape index: {}]
  %s4 = inlined_call_operand.hbm [shape: f32[64,128], index: 4, kind: input, shape index: {}]
  %s5 = inlined_call_operand.vmem [shape: f32[1,128], index: 5, kind: input, shape index: {}]
  %s6 = inlined_call_operand.hbm [shape: f32[64,64], index: 6, kind: input, shape index: {}]
  %s7 = inlined_call_operand.vmem [shape: f32[1,64], index: 7, kind: input, shape index: {}]
  %s8 = inlined_call_operand.hbm [shape: f32[2,8,64], index: 8, kind: output, shape index: {0}]
  %s9 = inlined_call_operand.vmem [shape: f32[2,4,8,8], index: 9, kind: output, shape index: {1}]
  %10 = xla_tuple %s8, %s9
  %s11 = sld [smem:[#allocation0]]
  $region93: #{multi_head_attention.1} parent=0
    _
  %s13 = ssub.s32 1, %s11
  %s14 = scalar_select 0, %s13, %s11
  $region1: #{multi_head_attention.1} parent=0
    #allocation2 [shape = 'u8[8192]{0}', space=vmem, size = 0x2000, scoped, tag = 'input window, operand 0']
    #allocation3 [shape = 's32[2]{0}', space=sflag, size = 0x8, scoped, tag = 'scoped memory for multi_head_attention.1']
    #allocation4 [shape = 's32[2]{0}', space=sflag, size = 0x8, scoped, tag = 'scoped memory for multi_head_attention.1']
    #allocation5 [shape = 'u8[8192]{0}', space=vmem, size = 0x2000, scoped, tag = 'input window, operand 1']
    #allocation6 [shape = 's32[2]{0}', space=sflag, size = 0x8, scoped, tag = 'scoped memory for multi_head_attention.1']
    #allocation7 [shape = 'u8[32768]{0}', space=vmem, size = 0x8000, scoped, tag = 'input window, operand 2, single buffered']
    #allocation8 [shape = 'u8[32768]{0}', space=vmem, size = 0x8000, scoped, tag = 'input window, operand 4, single buffered']
    #allocation9 [shape = 's32[1]{0}', space=sflag, size = 0x4, scoped, tag = 'scoped memory for multi_head_attention.1']
    #allocation10 [shape = 'u8[32768]{0}', space=vmem, size = 0x8000, scoped, tag = 'input window, operand 6, single buffered']
    #allocation11 [shape = 'u8[8192]{0}', space=vmem, size = 0x2000, scoped, tag = 'output window, operand 0']
    %15 = vsyncpa [#allocation3], 0
    %s16 = scalar_lea.sflag [#allocation3], 1
    %17 = vsyncpa %s16, 0
    %18 = vsyncpa [#allocation6], 0
    %s19 = scalar_lea.sflag [#allocation6], 1
    %20 = vsyncpa %s19, 0
    %21 = vsyncpa [#allocation9], 0
    %22 = vsyncpa [#allocation4], 0
    %s23 = scalar_lea.sflag [#allocation4], 1
    %24 = vsyncpa %s23, 0
    loop: start=0, step=1, limit=4
    $region2: #{multi_head_attention.1} parent=1 // loop_pre_header
      _
    $region3: #{multi_head_attention.1} parent=1 // loop_header
      %s26 = sphi 0, %s30
      %p27 = scmp.ge.s32.totalorder %s26, 4
      %s36 = sphi 0, %s38
      %s39 = sphi 0, %s36
      %s40 = sphi 0, %s39
      %s56 = sphi 0, %s40
      %s62 = sphi 0, %s64
      %s65 = sphi 0, %s62
      %s66 = sphi 0, %s65
      %s82 = sphi 0, %s66
      %s86 = sphi 0, %s86
      %s88 = sphi 0, %s86
      %s89 = sphi 0, %s88
      %s103 = sphi 0, %s89
      %s107 = sphi 0, %s107
      %s109 = sphi 0, %s107
      %s110 = sphi 0, %s109
      %s124 = sphi 0, %s110
      %s128 = sphi 0, %s128
      %s130 = sphi 0, %s128
      %s131 = sphi 0, %s130
      %s145 = sphi 0, %s131
      %s149 = sphi 0, %s149
      %s151 = sphi 0, %s149
      %s152 = sphi 0, %s151
      %s166 = sphi 0, %s152
      %s170 = sphi 0, %s170
      %s172 = sphi 0, %s170
      %s173 = sphi 0, %s172
      %s187 = sphi 0, %s173
      %s191 = sphi 0, %s191
      %s193 = sphi 0, %s191
      %s194 = sphi 0, %s193
      %s208 = sphi 0, %s194
      %s214 = sphi 0, %s216
      %s217 = sphi 0, %s214
      %s218 = sphi 0, %s217
      %s234 = sphi 0, %s218
      %s240 = sphi 0, %s242
      %s243 = sphi 0, %s240
      %s244 = sphi 0, %s243
      %s260 = sphi 0, %s244
    $region4: #{multi_head_attention.1} parent=1 // loop_header_branch
      %29 = sbr.rel (%p27) target = $region8
    $region5: #{multi_head_attention.1} parent=1 // loop_body
      %s31 = ssub.s32 %s26, 1
      %s32 = ssub.s32 %s26, 2
      %s33 = sadd.s32 %s26, 1
      %s34 = ssub.s32 %s26, %s33
      %p35 = scmp.eq.s32.totalorder %s34, 0
      %s37 = sadd.s32 %s36, 1
      %s38 = scalar_select %p35, %s36, %s37
      %p41 = pneg %p35
      %p42 = scmp.eq.s32.totalorder %s26, 1
      %p43 = por %p41, %p42
      %p44 = scmp.ne.s32.totalorder %s36, %s39
      %p45 = scmp.eq.s32.totalorder %s26, 0
      %p46 = por %p44, %p45
      %p47 = scmp.ne.s32.totalorder %s36, %s39
      %p48 = scmp.eq.s32.totalorder %s31, 1
      %p49 = por %p47, %p48
      %p50 = scmp.ne.s32.totalorder %s39, %s40
      %p51 = scmp.eq.s32.totalorder %s31, 0
      %p52 = por %p50, %p51
      %p53 = scmp.ne.s32.totalorder %s39, %s40
      %p54 = scmp.eq.s32.totalorder %s32, 1
      %p55 = por %p53, %p54
      %p57 = scmp.ne.s32.totalorder %s40, %s56
      %p58 = scmp.eq.s32.totalorder %s32, 0
      %p59 = por %p57, %p58
      %s60 = ssub.s32 %s26, %s33
      %p61 = scmp.eq.s32.totalorder %s60, 0
      %s63 = sadd.s32 %s62, 1
      %s64 = scalar_select %p61, %s62, %s63
      %p67 = pneg %p61
      %p68 = scmp.eq.s32.totalorder %s26, 1
      %p69 = por %p67, %p68
      %p70 = scmp.ne.s32.totalorder %s62, %s65
      %p71 = scmp.eq.s32.totalorder %s26, 0
      %p72 = por %p70, %p71
      %p73 = scmp.ne.s32.totalorder %s62, %s65
      %p74 = scmp.eq.s32.totalorder %s31, 1
      %p75 = por %p73, %p74
      %p76 = scmp.ne.s32.totalorder %s65, %s66
      %p77 = scmp.eq.s32.totalorder %s31, 0
      %p78 = por %p76, %p77
      %p79 = scmp.ne.s32.totalorder %s65, %s66
      %p80 = scmp.eq.s32.totalorder %s32, 1
      %p81 = por %p79, %p80
      %p83 = scmp.ne.s32.totalorder %s66, %s82
      %p84 = scmp.eq.s32.totalorder %s32, 0
      %p85 = por %p83, %p84
      %s87 = sadd.s32 %s86, 1
      %p90 = scmp.eq.s32.totalorder %s26, 1
      %p91 = scmp.ne.s32.totalorder %s86, %s88
      %p92 = scmp.eq.s32.totalorder %s26, 0
      %p93 = por %p91, %p92
      %p94 = scmp.ne.s32.totalorder %s86, %s88
      %p95 = scmp.eq.s32.totalorder %s31, 1
      %p96 = por %p94, %p95
      %p97 = scmp.ne.s32.totalorder %s88, %s89
      %p98 = scmp.eq.s32.totalorder %s31, 0
      %p99 = por %p97, %p98
      %p100 = scmp.ne.s32.totalorder %s88, %s89
      %p101 = scmp.eq.s32.totalorder %s32, 1
      %p102 = por %p100, %p101
      %p104 = scmp.ne.s32.totalorder %s89, %s103
      %p105 = scmp.eq.s32.totalorder %s32, 0
      %p106 = por %p104, %p105
      %s108 = sadd.s32 %s107, 1
      %p111 = scmp.eq.s32.totalorder %s26, 1
      %p112 = scmp.ne.s32.totalorder %s107, %s109
      %p113 = scmp.eq.s32.totalorder %s26, 0
      %p114 = por %p112, %p113
      %p115 = scmp.ne.s32.totalorder %s107, %s109
      %p116 = scmp.eq.s32.totalorder %s31, 1
      %p117 = por %p115, %p116
      %p118 = scmp.ne.s32.totalorder %s109, %s110
      %p119 = scmp.eq.s32.totalorder %s31, 0
      %p120 = por %p118, %p119
      %p121 = scmp.ne.s32.totalorder %s109, %s110
      %p122 = scmp.eq.s32.totalorder %s32, 1
      %p123 = por %p121, %p122
      %p125 = scmp.ne.s32.totalorder %s110, %s124
      %p126 = scmp.eq.s32.totalorder %s32, 0
      %p127 = por %p125, %p126
      %s129 = sadd.s32 %s128, 1
      %p132 = scmp.eq.s32.totalorder %s26, 1
      %p133 = scmp.ne.s32.totalorder %s128, %s130
      %p134 = scmp.eq.s32.totalorder %s26, 0
      %p135 = por %p133, %p134
      %p136 = scmp.ne.s32.totalorder %s128, %s130
      %p137 = scmp.eq.s32.totalorder %s31, 1
      %p138 = por %p136, %p137
      %p139 = scmp.ne.s32.totalorder %s130, %s131
      %p140 = scmp.eq.s32.totalorder %s31, 0
      %p141 = por %p139, %p140
      %p142 = scmp.ne.s32.totalorder %s130, %s131
      %p143 = scmp.eq.s32.totalorder %s32, 1
      %p144 = por %p142, %p143
      %p146 = scmp.ne.s32.totalorder %s131, %s145
      %p147 = scmp.eq.s32.totalorder %s32, 0
      %p148 = por %p146, %p147
      %s150 = sadd.s32 %s149, 1
      %p153 = scmp.eq.s32.totalorder %s26, 1
      %p154 = scmp.ne.s32.totalorder %s149, %s151
      %p155 = scmp.eq.s32.totalorder %s26, 0
      %p156 = por %p154, %p155
      %p157 = scmp.ne.s32.totalorder %s149, %s151
      %p158 = scmp.eq.s32.totalorder %s31, 1
      %p159 = por %p157, %p158
      %p160 = scmp.ne.s32.totalorder %s151, %s152
      %p161 = scmp.eq.s32.totalorder %s31, 0
      %p162 = por %p160, %p161
      %p163 = scmp.ne.s32.totalorder %s151, %s152
      %p164 = scmp.eq.s32.totalorder %s32, 1
      %p165 = por %p163, %p164
      %p167 = scmp.ne.s32.totalorder %s152, %s166
      %p168 = scmp.eq.s32.totalorder %s32, 0
      %p169 = por %p167, %p168
      %s171 = sadd.s32 %s170, 1
      %p174 = scmp.eq.s32.totalorder %s26, 1
      %p175 = scmp.ne.s32.totalorder %s170, %s172
      %p176 = scmp.eq.s32.totalorder %s26, 0
      %p177 = por %p175, %p176
      %p178 = scmp.ne.s32.totalorder %s170, %s172
      %p179 = scmp.eq.s32.totalorder %s31, 1
      %p180 = por %p178, %p179
      %p181 = scmp.ne.s32.totalorder %s172, %s173
      %p182 = scmp.eq.s32.totalorder %s31, 0
      %p183 = por %p181, %p182
      %p184 = scmp.ne.s32.totalorder %s172, %s173
      %p185 = scmp.eq.s32.totalorder %s32, 1
      %p186 = por %p184, %p185
      %p188 = scmp.ne.s32.totalorder %s173, %s187
      %p189 = scmp.eq.s32.totalorder %s32, 0
      %p190 = por %p188, %p189
      %s192 = sadd.s32 %s191, 1
      %p195 = scmp.eq.s32.totalorder %s26, 1
      %p196 = scmp.ne.s32.totalorder %s191, %s193
      %p197 = scmp.eq.s32.totalorder %s26, 0
      %p198 = por %p196, %p197
      %p199 = scmp.ne.s32.totalorder %s191, %s193
      %p200 = scmp.eq.s32.totalorder %s31, 1
      %p201 = por %p199, %p200
      %p202 = scmp.ne.s32.totalorder %s193, %s194
      %p203 = scmp.eq.s32.totalorder %s31, 0
      %p204 = por %p202, %p203
      %p205 = scmp.ne.s32.totalorder %s193, %s194
      %p206 = scmp.eq.s32.totalorder %s32, 1
      %p207 = por %p205, %p206
      %p209 = scmp.ne.s32.totalorder %s194, %s208
      %p210 = scmp.eq.s32.totalorder %s32, 0
      %p211 = por %p209, %p210
      %s212 = ssub.s32 %s26, %s33
      %p213 = scmp.eq.s32.totalorder %s212, 0
      %s215 = sadd.s32 %s214, 1
      %s216 = scalar_select %p213, %s214, %s215
      %p219 = pneg %p213
      %p220 = scmp.eq.s32.totalorder %s26, 1
      %p221 = por %p219, %p220
      %p222 = scmp.ne.s32.totalorder %s214, %s217
      %p223 = scmp.eq.s32.totalorder %s26, 0
      %p224 = por %p222, %p223
      %p225 = scmp.ne.s32.totalorder %s214, %s217
      %p226 = scmp.eq.s32.totalorder %s31, 1
      %p227 = por %p225, %p226
      %p228 = scmp.ne.s32.totalorder %s217, %s218
      %p229 = scmp.eq.s32.totalorder %s31, 0
      %p230 = por %p228, %p229
      %p231 = scmp.ne.s32.totalorder %s217, %s218
      %p232 = scmp.eq.s32.totalorder %s32, 1
      %p233 = por %p231, %p232
      %p235 = scmp.ne.s32.totalorder %s218, %s234
      %p236 = scmp.eq.s32.totalorder %s32, 0
      %p237 = por %p235, %p236
      %s238 = ssub.s32 %s26, %s33
      %p239 = scmp.eq.s32.totalorder %s238, 0
      %s241 = sadd.s32 %s240, 1
      %s242 = scalar_select %p239, %s240, %s241
      %p245 = pneg %p239
      %p246 = scmp.eq.s32.totalorder %s26, 1
      %p247 = por %p245, %p246
      %p248 = scmp.ne.s32.totalorder %s240, %s243
      %p249 = scmp.eq.s32.totalorder %s26, 0
      %p250 = por %p248, %p249
      %p251 = scmp.ne.s32.totalorder %s240, %s243
      %p252 = scmp.eq.s32.totalorder %s31, 1
      %p253 = por %p251, %p252
      %p254 = scmp.ne.s32.totalorder %s243, %s244
      %p255 = scmp.eq.s32.totalorder %s31, 0
      %p256 = por %p254, %p255
      %p257 = scmp.ne.s32.totalorder %s243, %s244
      %p258 = scmp.eq.s32.totalorder %s32, 1
      %p259 = por %p257, %p258
      %p261 = scmp.ne.s32.totalorder %s244, %s260
      %p262 = scmp.eq.s32.totalorder %s32, 0
      %p263 = por %p261, %p262
      %p264 = scmp.le.s32.totalorder 1, %s26
      %p265 = scmp.lt.s32.totalorder %s26, 3
      %p266 = pnand %p264, %p265
      %p267 = pneg %p266
      // Predicated region
      $region9: #{multi_head_attention.1} parent=5 // pred_check
        _
      $region10: #{multi_head_attention.1} parent=5 // pred_check_branch
        %269 = sbr.rel (%p266) target = $region12
      $region11: #{multi_head_attention.1} parent=5 // pred_region
        %s270 = ssub.s32 %s26, 1
        // Predicated region
        $region13: #{multi_head_attention.1} parent=11 // pred_check
          %p271 = pneg %p99
        $region14: #{multi_head_attention.1} parent=11 // pred_check_branch
          %273 = sbr.rel (%p271) target = $region16
        $region15: #{multi_head_attention.1} parent=11 // pred_region
          %s275 = ssub.s32 1024, 1024
          %276 = vsyncadd [#allocation6], %s275
          %s277 = sshll.u32 [#allocation7], 4
          %s278 = int_to_ptr.vmem [resolvable:$true] %s277
          %283 = dma.hbm_to_vmem [thread:$0]  %s2, 1024, %s278, [#allocation6], 128, 128, 8
        $region16: #{multi_head_attention.1} parent=11 // pred_fallthru
          _
        // Predicated region
        $region17: #{multi_head_attention.1} parent=11 // pred_check
          %p284 = pneg %p120
        $region18: #{multi_head_attention.1} parent=11 // pred_check_branch
          %286 = sbr.rel (%p284) target = $region20
        $region19: #{multi_head_attention.1} parent=11 // pred_region
          _
        $region20: #{multi_head_attention.1} parent=11 // pred_fallthru
          _
        // Predicated region
        $region21: #{multi_head_attention.1} parent=11 // pred_check
          %p287 = pneg %p141
        $region22: #{multi_head_attention.1} parent=11 // pred_check_branch
          %289 = sbr.rel (%p287) target = $region24
        $region23: #{multi_head_attention.1} parent=11 // pred_region
          %s291 = ssub.s32 1024, 1024
          %292 = vsyncadd [#allocation9], %s291
          %s293 = sshll.u32 [#allocation8], 4
          %s294 = int_to_ptr.vmem [resolvable:$true] %s293
          %299 = dma.hbm_to_vmem [thread:$0]  %s4, 1024, %s294, [#allocation9], 128, 128, 8
        $region24: #{multi_head_attention.1} parent=11 // pred_fallthru
          _
        // Predicated region
        $region25: #{multi_head_attention.1} parent=11 // pred_check
          %p300 = pneg %p162
        $region26: #{multi_head_attention.1} parent=11 // pred_check_branch
          %302 = sbr.rel (%p300) target = $region28
        $region27: #{multi_head_attention.1} parent=11 // pred_region
          _
        $region28: #{multi_head_attention.1} parent=11 // pred_fallthru
          _
        // Predicated region
        $region29: #{multi_head_attention.1} parent=11 // pred_check
          %p303 = pneg %p183
        $region30: #{multi_head_attention.1} parent=11 // pred_check_branch
          %305 = sbr.rel (%p303) target = $region32
        $region31: #{multi_head_attention.1} parent=11 // pred_region
          %s307 = ssub.s32 1024, 1024
          %308 = vsyncadd [#allocation9], %s307
          %s309 = sshll.u32 [#allocation10], 4
          %s310 = int_to_ptr.vmem [resolvable:$true] %s309
          %315 = dma.hbm_to_vmem [thread:$0]  %s6, 1024, %s310, [#allocation9], 128, 128, 8
        $region32: #{multi_head_attention.1} parent=11 // pred_fallthru
          _
        // Predicated region
        $region33: #{multi_head_attention.1} parent=11 // pred_check
          %p316 = pneg %p204
        $region34: #{multi_head_attention.1} parent=11 // pred_check_branch
          %318 = sbr.rel (%p316) target = $region36
        $region35: #{multi_head_attention.1} parent=11 // pred_region
          _
        $region36: #{multi_head_attention.1} parent=11 // pred_fallthru
          _
      $region12: #{multi_head_attention.1} parent=5 // pred_fallthru
        _
      %p319 = scmp.lt.s32.totalorder %s26, 2
      // Predicated region
      $region37: #{multi_head_attention.1} parent=5 // pred_check
        %p320 = pneg %p319
      $region38: #{multi_head_attention.1} parent=5 // pred_check_branch
        %322 = sbr.rel (%p320) target = $region40
      $region39: #{multi_head_attention.1} parent=5 // pred_region
        // Predicated region
        $region41: #{multi_head_attention.1} parent=39 // pred_check
          %p323 = pneg %p46
        $region42: #{multi_head_attention.1} parent=39 // pred_check_branch
          %325 = sbr.rel (%p323) target = $region44
        $region43: #{multi_head_attention.1} parent=39 // pred_region
          %s326 = sand.u32 %s36, 1
          %s327 = scalar_lea.sflag [#allocation3], %s326
          %s328 = sand.u32 %s36, 1
          %s329 = smul.addr %s328, 8
          %s330 = scalar_lea.vmem [#allocation2], %s329
          %s332 = ssub.s32 128, 128
          %333 = vsyncadd %s327, %s332
          %s334 = smul.addr %s26, 128
          %s335 = scalar_lea.hbm %s0, %s334
          %s337 = sshll.u32 %s330, 4
          %s338 = int_to_ptr.vmem [resolvable:$true] %s337
          %340 = dma.hbm_to_vmem [thread:$0]  %s335, 128, %s338, %s327
        $region44: #{multi_head_attention.1} parent=39 // pred_fallthru
          _
        // Predicated region
        $region45: #{multi_head_attention.1} parent=39 // pred_check
          %p341 = pneg %p72
        $region46: #{multi_head_attention.1} parent=39 // pred_check_branch
          %343 = sbr.rel (%p341) target = $region48
        $region47: #{multi_head_attention.1} parent=39 // pred_region
          %s344 = sand.u32 %s26, 1
          %s345 = scalar_lea.sflag [#allocation6], %s344
          %s346 = sand.u32 %s62, 1
          %s347 = smul.addr %s346, 8
          %s348 = scalar_lea.vmem [#allocation5], %s347
          %s350 = ssub.s32 128, 128
          %351 = vsyncadd %s345, %s350
          %s352 = smul.addr %s26, 128
          %s353 = scalar_lea.hbm %s1, %s352
          %s355 = sshll.u32 %s348, 4
          %s356 = int_to_ptr.vmem [resolvable:$true] %s355
          %358 = dma.hbm_to_vmem [thread:$0]  %s353, 128, %s356, %s345
        $region48: #{multi_head_attention.1} parent=39 // pred_fallthru
          _
      $region40: #{multi_head_attention.1} parent=5 // pred_fallthru
        _
      %p359 = scmp.le.s32.totalorder 1, %s26
      %p360 = scmp.lt.s32.totalorder %s26, 3
      %p361 = pnand %p359, %p360
      %p362 = pneg %p361
      // Predicated region
      $region49: #{multi_head_attention.1} parent=5 // pred_check
        _
      $region50: #{multi_head_attention.1} parent=5 // pred_check_branch
        %364 = sbr.rel (%p361) target = $region52
      $region51: #{multi_head_attention.1} parent=5 // pred_region
        %s365 = ssub.s32 %s26, 1
        %s366 = sand.u32 %s39, 1
        %s367 = scalar_lea.sflag [#allocation3], %s366
        %s368 = sand.u32 %s39, 1
        %s369 = smul.addr %s368, 8
        %s370 = scalar_lea.vmem [#allocation2], %s369
        // Predicated region
        $region53: #{multi_head_attention.1} parent=51 // pred_check
          %p371 = pneg %p52
        $region54: #{multi_head_attention.1} parent=51 // pred_check_branch
          %373 = sbr.rel (%p371) target = $region56
        $region55: #{multi_head_attention.1} parent=51 // pred_region
          %374 = dma.done %s367, 128
        $region56: #{multi_head_attention.1} parent=51 // pred_fallthru
          _
        %s375 = sand.u32 %s31, 1
        %s376 = scalar_lea.sflag [#allocation6], %s375
        %s377 = sand.u32 %s65, 1
        %s378 = smul.addr %s377, 8
        %s379 = scalar_lea.vmem [#allocation5], %s378
        // Predicated region
        $region57: #{multi_head_attention.1} parent=51 // pred_check
          %p380 = pneg %p78
        $region58: #{multi_head_attention.1} parent=51 // pred_check_branch
          %382 = sbr.rel (%p380) target = $region60
        $region59: #{multi_head_attention.1} parent=51 // pred_region
          %383 = dma.done %s376, 128
        $region60: #{multi_head_attention.1} parent=51 // pred_fallthru
          _
        // Predicated region
        $region61: #{multi_head_attention.1} parent=51 // pred_check
          %p384 = pneg %p99
        $region62: #{multi_head_attention.1} parent=51 // pred_check_branch
          %386 = sbr.rel (%p384) target = $region64
        $region63: #{multi_head_attention.1} parent=51 // pred_region
          %387 = dma.done [#allocation6], 1024
        $region64: #{multi_head_attention.1} parent=51 // pred_fallthru
          _
        // Predicated region
        $region65: #{multi_head_attention.1} parent=51 // pred_check
          %p388 = pneg %p141
        $region66: #{multi_head_attention.1} parent=51 // pred_check_branch
          %390 = sbr.rel (%p388) target = $region68
        $region67: #{multi_head_attention.1} parent=51 // pred_region
          %391 = dma.done [#allocation9], 1024
        $region68: #{multi_head_attention.1} parent=51 // pred_fallthru
          _
        // Predicated region
        $region69: #{multi_head_attention.1} parent=51 // pred_check
          %p392 = pneg %p183
        $region70: #{multi_head_attention.1} parent=51 // pred_check_branch
          %394 = sbr.rel (%p392) target = $region72
        $region71: #{multi_head_attention.1} parent=51 // pred_region
          %395 = dma.done [#allocation9], 1024
        $region72: #{multi_head_attention.1} parent=51 // pred_fallthru
          _
        %s396 = sand.u32 %s39, 1
        %s397 = scalar_lea.sflag [#allocation3], %s396
        %s398 = sand.u32 %s39, 1
        %s399 = smul.addr %s398, 8
        %s400 = scalar_lea.vmem [#allocation2], %s399
        %p401 = pneg %p52
        %p402 = pneg %p49
        %s403 = sand.u32 %s31, 1
        %s404 = scalar_lea.sflag [#allocation6], %s403
        %s405 = sand.u32 %s65, 1
        %s406 = smul.addr %s405, 8
        %s407 = scalar_lea.vmem [#allocation5], %s406
        %p408 = pneg %p78
        %p409 = pneg %p75
        %p410 = pneg %p99
        %p411 = pneg %p96
        %p412 = pneg %p120
        %p413 = pneg %p117
        %p414 = pneg %p141
        %p415 = pneg %p138
        %p416 = pneg %p162
        %p417 = pneg %p159
        %p418 = pneg %p183
        %p419 = pneg %p180
        %p420 = pneg %p204
        %p421 = pneg %p201
        %p422 = pneg %p230
        %p423 = pneg %p227
        %s424 = sand.u32 %s217, 1
        %s425 = scalar_lea.sflag [#allocation4], %s424
        %s426 = sand.u32 %s217, 1
        %s427 = smul.addr %s426, 8
        %s428 = scalar_lea.vmem [#allocation11], %s427
        %p429 = pneg %p256
        %p430 = pneg %p253
        %p431 = scmp.lt.s32.totalorder %s31, 1
        %s432 = scalar_select %p431, %s31, 1
        %s433 = smul.addr %s432, 4
        %s434 = smul.addr %s433, 8
        %s435 = scalar_lea.vmem %s9, %s434
        %p436 = scmp.lt.s32.totalorder %s31, 1
        %s437 = scalar_select %p436, %s31, 1
        %s438 = smul.addr %s437, 4
        %s439 = smul.addr %s438, 8
        %s440 = scalar_lea.vmem %s9, %s439
        %v441 = vld [vmem:[%s370] sm:$0xff]
        %v442 = vld [vmem:[%s379] sm:$0xff]
        %v443 = vld [vmem:[#allocation7] sm:$0xff]
        %v444 = vld [vmem:[#allocation7 + $0x8] sm:$0xff]
        %v445 = vld [vmem:[#allocation7 + $0x10] sm:$0xff]
        %v446 = vld [vmem:[#allocation7 + $0x18] sm:$0xff]
        %v447 = vld [vmem:[#allocation7 + $0x20] sm:$0xff]
        %v448 = vld [vmem:[#allocation7 + $0x28] sm:$0xff]
        %v449 = vld [vmem:[#allocation7 + $0x30] sm:$0xff]
        %v450 = vld [vmem:[#allocation7 + $0x38] sm:$0xff]
        %v451 = vld [vmem:[%s3] sm:$0x1]
        %v453 = vlaneseq
        %v454 = vshrl.u32 %v453, 7
        %v455 = vsub.s32 0, %v454
        %v456 = vrot.slane %v451, %v455
        %vm458 = vcmask 523264
        %v460 = vsel %vm458, %v441, 0
        %462 = vmatprep.subr.mxu0 0.0
        %463 = vmatpush1.msra.mxu0 %v443
        %464 = vmatprep.subr.mxu0 0.0
        %465 = vmatpush1.msra.mxu0 %v444
        %466 = vmatprep.subr.mxu0 0.0
        %467 = vmatpush1.msra.mxu0 %v445
        %468 = vmatprep.subr.mxu0 0.0
        %469 = vmatpush1.msra.mxu0 %v446
        %470 = vmatprep.subr.mxu0 0.0
        %471 = vmatpush1.msra.mxu0 %v447
        %472 = vmatprep.subr.mxu0 0.0
        %473 = vmatpush1.msra.mxu0 %v448
        %474 = vmatprep.subr.mxu0 0.0
        %475 = vmatpush1.msra.mxu0 %v449
        %476 = vmatprep.subr.mxu0 0.0
        %477 = vmatpush1.msra.mxu0 %v450
        %478 = vmatprep.subr.mxu0 0.0
        %479 = vmatpush1.msra.mxu0 0.0
        %480 = vmatprep.subr.mxu0 0.0
        %481 = vmatpush1.msra.mxu0 0.0
        %482 = vmatprep.subr.mxu0 0.0
        %483 = vmatpush1.msra.mxu0 0.0
        %484 = vmatprep.subr.mxu0 0.0
        %485 = vmatpush1.msra.mxu0 0.0
        %486 = vmatprep.subr.mxu0 0.0
        %487 = vmatpush1.msra.mxu0 0.0
        %488 = vmatprep.subr.mxu0 0.0
        %489 = vmatpush1.msra.mxu0 0.0
        %490 = vmatprep.subr.mxu0 0.0
        %491 = vmatpush1.msra.mxu0 0.0
        %492 = vmatprep.subr.mxu0 0.0
        %493 = vmatpush1.msra.mxu0 0.0
        %494 = vmatprep.subr.mxu0 0.0
        %495 = vmatpush1.msra.mxu0 0.0
        %496 = vmatprep.subr.mxu0 0.0
        %497 = vmatpush1.msra.mxu0 0.0
        %498 = vmatprep.subr.mxu0 0.0
        %499 = vmatpush1.msra.mxu0 0.0
        %500 = vmatprep.subr.mxu0 0.0
        %501 = vmatpush1.msra.mxu0 0.0
        %502 = vmatprep.subr.mxu0 0.0
        %503 = vmatpush1.msra.mxu0 0.0
        %504 = vmatprep.subr.mxu0 0.0
        %505 = vmatpush1.msra.mxu0 0.0
        %506 = vmatprep.subr.mxu0 0.0
        %507 = vmatpush1.msra.mxu0 0.0
        %508 = vmatprep.subr.mxu0 0.0
        %509 = vmatpush1.msra.mxu0 0.0
        %510 = vmatprep.subr.mxu0 0.0
        %511 = vmatpush1.msra.mxu0 0.0
        %512 = vmatprep.subr.mxu0 0.0
        %513 = vmatpush1.msra.mxu0 0.0
        %514 = vmatprep.subr.mxu0 0.0
        %515 = vmatpush1.msra.mxu0 0.0
        %516 = vmatprep.subr.mxu0 0.0
        %517 = vmatpush1.msra.mxu0 0.0
        %518 = vmatprep.subr.mxu0 0.0
        %519 = vmatpush1.msra.mxu0 0.0
        %520 = vmatprep.subr.mxu0 0.0
        %521 = vmatpush1.msra.mxu0 0.0
        %522 = vmatprep.subr.mxu0 0.0
        %523 = vmatpush1.msra.mxu0 0.0
        %524 = vmatprep.subr.mxu0 0.0
        %525 = vmatpush1.msra.mxu0 0.0
        %526 = vmatprep.mubr.f32.mxu0 0.0
        %527 = vmatmul.mubr.f32.gmra.mrb[0].mxu0 %v460
        %v528 = vpop.f32.mrb[0].mxu0
        %v529 = vadd.f32 %v456, %v528
        %v530 = vpop.f32.mrb[0].mxu0
        %531 = vdwg.mxu0
        %v532 = vld [vmem:[#allocation8] sm:$0xff]
        %v533 = vld [vmem:[#allocation8 + $0x8] sm:$0xff]
        %v534 = vld [vmem:[#allocation8 + $0x10] sm:$0xff]
        %v535 = vld [vmem:[#allocation8 + $0x18] sm:$0xff]
        %v536 = vld [vmem:[#allocation8 + $0x20] sm:$0xff]
        %v537 = vld [vmem:[#allocation8 + $0x28] sm:$0xff]
        %v538 = vld [vmem:[#allocation8 + $0x30] sm:$0xff]
        %v539 = vld [vmem:[#allocation8 + $0x38] sm:$0xff]
        %v540 = vld [vmem:[%s5] sm:$0x1]
        %v542 = vlaneseq
        %v543 = vshrl.u32 %v542, 7
        %v544 = vsub.s32 0, %v543
        %v545 = vrot.slane %v540, %v544
        %v548 = vsel %vm458, %v442, 0
        %550 = vmatprep.subr.mxu0 0.0
        %551 = vmatpush1.msra.mxu0 %v532
        %552 = vmatprep.subr.mxu0 0.0
        %553 = vmatpush1.msra.mxu0 %v533
        %554 = vmatprep.subr.mxu0 0.0
        %555 = vmatpush1.msra.mxu0 %v534
        %556 = vmatprep.subr.mxu0 0.0
        %557 = vmatpush1.msra.mxu0 %v535
        %558 = vmatprep.subr.mxu0 0.0
        %559 = vmatpush1.msra.mxu0 %v536
        %560 = vmatprep.subr.mxu0 0.0
        %561 = vmatpush1.msra.mxu0 %v537
        %562 = vmatprep.subr.mxu0 0.0
        %563 = vmatpush1.msra.mxu0 %v538
        %564 = vmatprep.subr.mxu0 0.0
        %565 = vmatpush1.msra.mxu0 %v539
        %566 = vmatprep.subr.mxu0 0.0
        %567 = vmatpush1.msra.mxu0 0.0
        %568 = vmatprep.subr.mxu0 0.0
        %569 = vmatpush1.msra.mxu0 0.0
        %570 = vmatprep.subr.mxu0 0.0
        %571 = vmatpush1.msra.mxu0 0.0
        %572 = vmatprep.subr.mxu0 0.0
        %573 = vmatpush1.msra.mxu0 0.0
        %574 = vmatprep.subr.mxu0 0.0
        %575 = vmatpush1.msra.mxu0 0.0
        %576 = vmatprep.subr.mxu0 0.0
        %577 = vmatpush1.msra.mxu0 0.0
        %578 = vmatprep.subr.mxu0 0.0
        %579 = vmatpush1.msra.mxu0 0.0
        %580 = vmatprep.subr.mxu0 0.0
        %581 = vmatpush1.msra.mxu0 0.0
        %582 = vmatprep.subr.mxu0 0.0
        %583 = vmatpush1.msra.mxu0 0.0
        %584 = vmatprep.subr.mxu0 0.0
        %585 = vmatpush1.msra.mxu0 0.0
        %586 = vmatprep.subr.mxu0 0.0
        %587 = vmatpush1.msra.mxu0 0.0
        %588 = vmatprep.subr.mxu0 0.0
        %589 = vmatpush1.msra.mxu0 0.0
        %590 = vmatprep.subr.mxu0 0.0
        %591 = vmatpush1.msra.mxu0 0.0
        %592 = vmatprep.subr.mxu0 0.0
        %593 = vmatpush1.msra.mxu0 0.0
        %594 = vmatprep.subr.mxu0 0.0
        %595 = vmatpush1.msra.mxu0 0.0
        %596 = vmatprep.subr.mxu0 0.0
        %597 = vmatpush1.msra.mxu0 0.0
        %598 = vmatprep.subr.mxu0 0.0
        %599 = vmatpush1.msra.mxu0 0.0
        %600 = vmatprep.subr.mxu0 0.0
        %601 = vmatpush1.msra.mxu0 0.0
        %602 = vmatprep.subr.mxu0 0.0
        %603 = vmatpush1.msra.mxu0 0.0
        %604 = vmatprep.subr.mxu0 0.0
        %605 = vmatpush1.msra.mxu0 0.0
        %606 = vmatprep.subr.mxu0 0.0
        %607 = vmatpush1.msra.mxu0 0.0
        %608 = vmatprep.subr.mxu0 0.0
        %609 = vmatpush1.msra.mxu0 0.0
        %610 = vmatprep.subr.mxu0 0.0
        %611 = vmatpush1.msra.mxu0 0.0
        %612 = vmatprep.subr.mxu0 0.0
        %613 = vmatpush1.msra.mxu0 0.0
        %614 = vmatprep.mubr.f32.mxu0 0.0
        %615 = vmatmul.mubr.f32.gmra.mrb[0].mxu0 %v548
        %v616 = vpop.f32.mrb[0].mxu0
        %v617 = vadd.f32 %v545, %v616
        %v618 = vpop.f32.mrb[0].mxu0
        %619 = vdwg.mxu0
        %vm620 = vcmask 130048
        %v622 = vsel %vm620, %v529, 0
        %v625 = vsel %vm620, %v617, 0
        %627 = vmatprep.subr.mxu0 0.0
        %628 = vmatpush1.xpose.msra.mxu0 %v625
        %629 = vmatprep.subr.mxu0 0.0
        %630 = vmatpush1.xpose.msra.mxu0 0.0
        %631 = vmatprep.subr.mxu0 0.0
        %632 = vmatpush1.xpose.msra.mxu0 0.0
        %633 = vmatprep.subr.mxu0 0.0
        %634 = vmatpush1.xpose.msra.mxu0 0.0
        %635 = vmatprep.subr.mxu0 0.0
        %636 = vmatpush1.xpose.msra.mxu0 0.0
        %637 = vmatprep.subr.mxu0 0.0
        %638 = vmatpush1.xpose.msra.mxu0 0.0
        %639 = vmatprep.subr.mxu0 0.0
        %640 = vmatpush1.xpose.msra.mxu0 0.0
        %641 = vmatprep.subr.mxu0 0.0
        %642 = vmatpush1.xpose.msra.mxu0 0.0
        %643 = vmatprep.subr.mxu0 0.0
        %644 = vmatpush1.xpose.msra.mxu0 0.0
        %645 = vmatprep.subr.mxu0 0.0
        %646 = vmatpush1.xpose.msra.mxu0 0.0
        %647 = vmatprep.subr.mxu0 0.0
        %648 = vmatpush1.xpose.msra.mxu0 0.0
        %649 = vmatprep.subr.mxu0 0.0
        %650 = vmatpush1.xpose.msra.mxu0 0.0
        %651 = vmatprep.subr.mxu0 0.0
        %652 = vmatpush1.xpose.msra.mxu0 0.0
        %653 = vmatprep.subr.mxu0 0.0
        %654 = vmatpush1.xpose.msra.mxu0 0.0
        %655 = vmatprep.subr.mxu0 0.0
        %656 = vmatpush1.xpose.msra.mxu0 0.0
        %657 = vmatprep.subr.mxu0 0.0
        %658 = vmatpush1.xpose.msra.mxu0 0.0
        %659 = vmatprep.subr.mxu0 0.0
        %660 = vmatpush1.xpose.msra.mxu0 0.0
        %661 = vmatprep.subr.mxu0 0.0
        %662 = vmatpush1.xpose.msra.mxu0 0.0
        %663 = vmatprep.subr.mxu0 0.0
        %664 = vmatpush1.xpose.msra.mxu0 0.0
        %665 = vmatprep.subr.mxu0 0.0
        %666 = vmatpush1.xpose.msra.mxu0 0.0
        %667 = vmatprep.subr.mxu0 0.0
        %668 = vmatpush1.xpose.msra.mxu0 0.0
        %669 = vmatprep.subr.mxu0 0.0
        %670 = vmatpush1.xpose.msra.mxu0 0.0
        %671 = vmatprep.subr.mxu0 0.0
        %672 = vmatpush1.xpose.msra.mxu0 0.0
        %673 = vmatprep.subr.mxu0 0.0
        %674 = vmatpush1.xpose.msra.mxu0 0.0
        %675 = vmatprep.subr.mxu0 0.0
        %676 = vmatpush1.xpose.msra.mxu0 0.0
        %677 = vmatprep.subr.mxu0 0.0
        %678 = vmatpush1.xpose.msra.mxu0 0.0
        %679 = vmatprep.subr.mxu0 0.0
        %680 = vmatpush1.xpose.msra.mxu0 0.0
        %681 = vmatprep.subr.mxu0 0.0
        %682 = vmatpush1.xpose.msra.mxu0 0.0
        %683 = vmatprep.subr.mxu0 0.0
        %684 = vmatpush1.xpose.msra.mxu0 0.0
        %685 = vmatprep.subr.mxu0 0.0
        %686 = vmatpush1.xpose.msra.mxu0 0.0
        %687 = vmatprep.subr.mxu0 0.0
        %688 = vmatpush1.xpose.msra.mxu0 0.0
        %689 = vmatprep.subr.mxu0 0.0
        %690 = vmatpush1.xpose.msra.mxu0 0.0
        %691 = vmatprep.mubr.f32.mxu0 0.0
        %692 = vmatmul.mubr.f32.gmra.mrb[0].mxu0 %v622
        %v693 = vpop.f32.mrb[0].mxu0
        %v694 = vadd.f32 0.0, %v693
        %v695 = vpop.f32.mrb[0].mxu0
        %696 = vdwg.mxu0
        %v697 = vmul.f32 %v694, 0.25
        %vm698 = vcmask 64512
        %v699 = vsel %vm698, %v697, -inf
        %700 = vmax.xlane.f32.xlu0 %v699
        %v701 = vpop.xlane.xlu0 %700
        %v702 = vsub.f32 %v697, %v701
        %v703 = vmul.f32 %v702, 1.442695
        %v704 = vpow.pop %v703
        %v705 = vsel %vm698, %v704, 0.0
        %706 = vadd.xlane.f32.xlu0 %v705
        %v707 = vpop.xlane.xlu0 %706
        %v708 = vrcp.pop %v707
        %v709 = vmul.f32 %v704, %v708
        %710 = vst.msk [vmem:[%s440] sm:$0xff] %vm698, %v709
        %711 = vrot.lane.b32.xlu0 %v617, 64
        %v712 = vpop.permute.xlu0 %711
        %v715 = vsel %vm698, %v709, 0
        %717 = vmatprep.subr.mxu0 0.0
        %718 = vmatpush1.msra.mxu0 %v712
        %719 = vmatprep.subr.mxu0 0.0
        %720 = vmatpush1.msra.mxu0 0.0
        %721 = vmatprep.subr.mxu0 0.0
        %722 = vmatpush1.msra.mxu0 0.0
        %723 = vmatprep.subr.mxu0 0.0
        %724 = vmatpush1.msra.mxu0 0.0
        %725 = vmatprep.subr.mxu0 0.0
        %726 = vmatpush1.msra.mxu0 0.0
        %727 = vmatprep.subr.mxu0 0.0
        %728 = vmatpush1.msra.mxu0 0.0
        %729 = vmatprep.subr.mxu0 0.0
        %730 = vmatpush1.msra.mxu0 0.0
        %731 = vmatprep.subr.mxu0 0.0
        %732 = vmatpush1.msra.mxu0 0.0
        %733 = vmatprep.subr.mxu0 0.0
        %734 = vmatpush1.msra.mxu0 0.0
        %735 = vmatprep.subr.mxu0 0.0
        %736 = vmatpush1.msra.mxu0 0.0
        %737 = vmatprep.subr.mxu0 0.0
        %738 = vmatpush1.msra.mxu0 0.0
        %739 = vmatprep.subr.mxu0 0.0
        %740 = vmatpush1.msra.mxu0 0.0
        %741 = vmatprep.subr.mxu0 0.0
        %742 = vmatpush1.msra.mxu0 0.0
        %743 = vmatprep.subr.mxu0 0.0
        %744 = vmatpush1.msra.mxu0 0.0
        %745 = vmatprep.subr.mxu0 0.0
        %746 = vmatpush1.msra.mxu0 0.0
        %747 = vmatprep.subr.mxu0 0.0
        %748 = vmatpush1.msra.mxu0 0.0
        %749 = vmatprep.subr.mxu0 0.0
        %750 = vmatpush1.msra.mxu0 0.0
        %751 = vmatprep.subr.mxu0 0.0
        %752 = vmatpush1.msra.mxu0 0.0
        %753 = vmatprep.subr.mxu0 0.0
        %754 = vmatpush1.msra.mxu0 0.0
        %755 = vmatprep.subr.mxu0 0.0
        %756 = vmatpush1.msra.mxu0 0.0
        %757 = vmatprep.subr.mxu0 0.0
        %758 = vmatpush1.msra.mxu0 0.0
        %759 = vmatprep.subr.mxu0 0.0
        %760 = vmatpush1.msra.mxu0 0.0
        %761 = vmatprep.subr.mxu0 0.0
        %762 = vmatpush1.msra.mxu0 0.0
        %763 = vmatprep.subr.mxu0 0.0
        %764 = vmatpush1.msra.mxu0 0.0
        %765 = vmatprep.subr.mxu0 0.0
        %766 = vmatpush1.msra.mxu0 0.0
        %767 = vmatprep.subr.mxu0 0.0
        %768 = vmatpush1.msra.mxu0 0.0
        %769 = vmatprep.subr.mxu0 0.0
        %770 = vmatpush1.msra.mxu0 0.0
        %771 = vmatprep.subr.mxu0 0.0
        %772 = vmatpush1.msra.mxu0 0.0
        %773 = vmatprep.subr.mxu0 0.0
        %774 = vmatpush1.msra.mxu0 0.0
        %775 = vmatprep.subr.mxu0 0.0
        %776 = vmatpush1.msra.mxu0 0.0
        %777 = vmatprep.subr.mxu0 0.0
        %778 = vmatpush1.msra.mxu0 0.0
        %779 = vmatprep.subr.mxu0 0.0
        %780 = vmatpush1.msra.mxu0 0.0
        %781 = vmatprep.mubr.f32.mxu0 0.0
        %782 = vmatmul.mubr.f32.gmra.mrb[0].mxu0 %v715
        %v783 = vpop.f32.mrb[0].mxu0
        %v784 = vadd.f32 0.0, %v783
        %v785 = vpop.f32.mrb[0].mxu0
        %786 = vdwg.mxu0
        %787 = vrot.lane.b32.xlu0 %v529, 112
        %v788 = vpop.permute.xlu0 %787
        %789 = vrot.lane.b32.xlu0 %v617, 112
        %v790 = vpop.permute.xlu0 %789
        %v791 = vsel %vm620, %v788, 0
        %v793 = vsel %vm620, %v790, 0
        %795 = vmatprep.subr.mxu0 0.0
        %796 = vmatpush1.xpose.msra.mxu0 %v793
        %797 = vmatprep.subr.mxu0 0.0
        %798 = vmatpush1.xpose.msra.mxu0 0.0
        %799 = vmatprep.subr.mxu0 0.0
        %800 = vmatpush1.xpose.msra.mxu0 0.0
        %801 = vmatprep.subr.mxu0 0.0
        %802 = vmatpush1.xpose.msra.mxu0 0.0
        %803 = vmatprep.subr.mxu0 0.0
        %804 = vmatpush1.xpose.msra.mxu0 0.0
        %805 = vmatprep.subr.mxu0 0.0
        %806 = vmatpush1.xpose.msra.mxu0 0.0
        %807 = vmatprep.subr.mxu0 0.0
        %808 = vmatpush1.xpose.msra.mxu0 0.0
        %809 = vmatprep.subr.mxu0 0.0
        %810 = vmatpush1.xpose.msra.mxu0 0.0
        %811 = vmatprep.subr.mxu0 0.0
        %812 = vmatpush1.xpose.msra.mxu0 0.0
        %813 = vmatprep.subr.mxu0 0.0
        %814 = vmatpush1.xpose.msra.mxu0 0.0
        %815 = vmatprep.subr.mxu0 0.0
        %816 = vmatpush1.xpose.msra.mxu0 0.0
        %817 = vmatprep.subr.mxu0 0.0
        %818 = vmatpush1.xpose.msra.mxu0 0.0
        %819 = vmatprep.subr.mxu0 0.0
        %820 = vmatpush1.xpose.msra.mxu0 0.0
        %821 = vmatprep.subr.mxu0 0.0
        %822 = vmatpush1.xpose.msra.mxu0 0.0
        %823 = vmatprep.subr.mxu0 0.0
        %824 = vmatpush1.xpose.msra.mxu0 0.0
        %825 = vmatprep.subr.mxu0 0.0
        %826 = vmatpush1.xpose.msra.mxu0 0.0
        %827 = vmatprep.subr.mxu0 0.0
        %828 = vmatpush1.xpose.msra.mxu0 0.0
        %829 = vmatprep.subr.mxu0 0.0
        %830 = vmatpush1.xpose.msra.mxu0 0.0
        %831 = vmatprep.subr.mxu0 0.0
        %832 = vmatpush1.xpose.msra.mxu0 0.0
        %833 = vmatprep.subr.mxu0 0.0
        %834 = vmatpush1.xpose.msra.mxu0 0.0
        %835 = vmatprep.subr.mxu0 0.0
        %836 = vmatpush1.xpose.msra.mxu0 0.0
        %837 = vmatprep.subr.mxu0 0.0
        %838 = vmatpush1.xpose.msra.mxu0 0.0
        %839 = vmatprep.subr.mxu0 0.0
        %840 = vmatpush1.xpose.msra.mxu0 0.0
        %841 = vmatprep.subr.mxu0 0.0
        %842 = vmatpush1.xpose.msra.mxu0 0.0
        %843 = vmatprep.subr.mxu0 0.0
        %844 = vmatpush1.xpose.msra.mxu0 0.0
        %845 = vmatprep.subr.mxu0 0.0
        %846 = vmatpush1.xpose.msra.mxu0 0.0
        %847 = vmatprep.subr.mxu0 0.0
        %848 = vmatpush1.xpose.msra.mxu0 0.0
        %849 = vmatprep.subr.mxu0 0.0
        %850 = vmatpush1.xpose.msra.mxu0 0.0
        %851 = vmatprep.subr.mxu0 0.0
        %852 = vmatpush1.xpose.msra.mxu0 0.0
        %853 = vmatprep.subr.mxu0 0.0
        %854 = vmatpush1.xpose.msra.mxu0 0.0
        %855 = vmatprep.subr.mxu0 0.0
        %856 = vmatpush1.xpose.msra.mxu0 0.0
        %857 = vmatprep.subr.mxu0 0.0
        %858 = vmatpush1.xpose.msra.mxu0 0.0
        %859 = vmatprep.mubr.f32.mxu0 0.0
        %860 = vmatmul.mubr.f32.gmra.mrb[0].mxu0 %v791
        %v861 = vpop.f32.mrb[0].mxu0
        %v862 = vadd.f32 0.0, %v861
        %v863 = vpop.f32.mrb[0].mxu0
        %864 = vdwg.mxu0
        %v865 = vmul.f32 %v862, 0.25
        %v866 = vsel %vm698, %v865, -inf
        %867 = vmax.xlane.f32.xlu0 %v866
        %v868 = vpop.xlane.xlu0 %867
        %v869 = vsub.f32 %v865, %v868
        %v870 = vmul.f32 %v869, 1.442695
        %v871 = vpow.pop %v870
        %v872 = vsel %vm698, %v871, 0.0
        %873 = vadd.xlane.f32.xlu0 %v872
        %v874 = vpop.xlane.xlu0 %873
        %v875 = vrcp.pop %v874
        %v876 = vmul.f32 %v871, %v875
        %s877 = scalar_lea.vmem %s440, 8
        %878 = vst.msk [vmem:[%s877] sm:$0xff] %vm698, %v876
        %879 = vrot.lane.b32.xlu0 %v617, 48
        %v880 = vpop.permute.xlu0 %879
        %v883 = vsel %vm698, %v876, 0
        %885 = vmatprep.subr.mxu0 0.0
        %886 = vmatpush1.msra.mxu0 %v880
        %887 = vmatprep.subr.mxu0 0.0
        %888 = vmatpush1.msra.mxu0 0.0
        %889 = vmatprep.subr.mxu0 0.0
        %890 = vmatpush1.msra.mxu0 0.0
        %891 = vmatprep.subr.mxu0 0.0
        %892 = vmatpush1.msra.mxu0 0.0
        %893 = vmatprep.subr.mxu0 0.0
        %894 = vmatpush1.msra.mxu0 0.0
        %895 = vmatprep.subr.mxu0 0.0
        %896 = vmatpush1.msra.mxu0 0.0
        %897 = vmatprep.subr.mxu0 0.0
        %898 = vmatpush1.msra.mxu0 0.0
        %899 = vmatprep.subr.mxu0 0.0
        %900 = vmatpush1.msra.mxu0 0.0
        %901 = vmatprep.subr.mxu0 0.0
        %902 = vmatpush1.msra.mxu0 0.0
        %903 = vmatprep.subr.mxu0 0.0
        %904 = vmatpush1.msra.mxu0 0.0
        %905 = vmatprep.subr.mxu0 0.0
        %906 = vmatpush1.msra.mxu0 0.0
        %907 = vmatprep.subr.mxu0 0.0
        %908 = vmatpush1.msra.mxu0 0.0
        %909 = vmatprep.subr.mxu0 0.0
        %910 = vmatpush1.msra.mxu0 0.0
        %911 = vmatprep.subr.mxu0 0.0
        %912 = vmatpush1.msra.mxu0 0.0
        %913 = vmatprep.subr.mxu0 0.0
        %914 = vmatpush1.msra.mxu0 0.0
        %915 = vmatprep.subr.mxu0 0.0
        %916 = vmatpush1.msra.mxu0 0.0
        %917 = vmatprep.subr.mxu0 0.0
        %918 = vmatpush1.msra.mxu0 0.0
        %919 = vmatprep.subr.mxu0 0.0
        %920 = vmatpush1.msra.mxu0 0.0
        %921 = vmatprep.subr.mxu0 0.0
        %922 = vmatpush1.msra.mxu0 0.0
        %923 = vmatprep.subr.mxu0 0.0
        %924 = vmatpush1.msra.mxu0 0.0
        %925 = vmatprep.subr.mxu0 0.0
        %926 = vmatpush1.msra.mxu0 0.0
        %927 = vmatprep.subr.mxu0 0.0
        %928 = vmatpush1.msra.mxu0 0.0
        %929 = vmatprep.subr.mxu0 0.0
        %930 = vmatpush1.msra.mxu0 0.0
        %931 = vmatprep.subr.mxu0 0.0
        %932 = vmatpush1.msra.mxu0 0.0
        %933 = vmatprep.subr.mxu0 0.0
        %934 = vmatpush1.msra.mxu0 0.0
        %935 = vmatprep.subr.mxu0 0.0
        %936 = vmatpush1.msra.mxu0 0.0
        %937 = vmatprep.subr.mxu0 0.0
        %938 = vmatpush1.msra.mxu0 0.0
        %939 = vmatprep.subr.mxu0 0.0
        %940 = vmatpush1.msra.mxu0 0.0
        %941 = vmatprep.subr.mxu0 0.0
        %942 = vmatpush1.msra.mxu0 0.0
        %943 = vmatprep.subr.mxu0 0.0
        %944 = vmatpush1.msra.mxu0 0.0
        %945 = vmatprep.subr.mxu0 0.0
        %946 = vmatpush1.msra.mxu0 0.0
        %947 = vmatprep.subr.mxu0 0.0
        %948 = vmatpush1.msra.mxu0 0.0
        %949 = vmatprep.mubr.f32.mxu0 0.0
        %950 = vmatmul.mubr.f32.gmra.mrb[0].mxu0 %v883
        %v951 = vpop.f32.mrb[0].mxu0
        %v952 = vadd.f32 0.0, %v951
        %v953 = vpop.f32.mrb[0].mxu0
        %954 = vdwg.mxu0
        %955 = vrot.lane.b32.xlu0 %v529, 96
        %v956 = vpop.permute.xlu0 %955
        %957 = vrot.lane.b32.xlu0 %v617, 96
        %v958 = vpop.permute.xlu0 %957
        %v959 = vsel %vm620, %v956, 0
        %v961 = vsel %vm620, %v958, 0
        %963 = vmatprep.subr.mxu0 0.0
        %964 = vmatpush1.xpose.msra.mxu0 %v961
        %965 = vmatprep.subr.mxu0 0.0
        %966 = vmatpush1.xpose.msra.mxu0 0.0
        %967 = vmatprep.subr.mxu0 0.0
        %968 = vmatpush1.xpose.msra.mxu0 0.0
        %969 = vmatprep.subr.mxu0 0.0
        %970 = vmatpush1.xpose.msra.mxu0 0.0
        %971 = vmatprep.subr.mxu0 0.0
        %972 = vmatpush1.xpose.msra.mxu0 0.0
        %973 = vmatprep.subr.mxu0 0.0
        %974 = vmatpush1.xpose.msra.mxu0 0.0
        %975 = vmatprep.subr.mxu0 0.0
        %976 = vmatpush1.xpose.msra.mxu0 0.0
        %977 = vmatprep.subr.mxu0 0.0
        %978 = vmatpush1.xpose.msra.mxu0 0.0
        %979 = vmatprep.subr.mxu0 0.0
        %980 = vmatpush1.xpose.msra.mxu0 0.0
        %981 = vmatprep.subr.mxu0 0.0
        %982 = vmatpush1.xpose.msra.mxu0 0.0
        %983 = vmatprep.subr.mxu0 0.0
        %984 = vmatpush1.xpose.msra.mxu0 0.0
        %985 = vmatprep.subr.mxu0 0.0
        %986 = vmatpush1.xpose.msra.mxu0 0.0
        %987 = vmatprep.subr.mxu0 0.0
        %988 = vmatpush1.xpose.msra.mxu0 0.0
        %989 = vmatprep.subr.mxu0 0.0
        %990 = vmatpush1.xpose.msra.mxu0 0.0
        %991 = vmatprep.subr.mxu0 0.0
        %992 = vmatpush1.xpose.msra.mxu0 0.0
        %993 = vmatprep.subr.mxu0 0.0
        %994 = vmatpush1.xpose.msra.mxu0 0.0
        %995 = vmatprep.subr.mxu0 0.0
        %996 = vmatpush1.xpose.msra.mxu0 0.0
        %997 = vmatprep.subr.mxu0 0.0
        %998 = vmatpush1.xpose.msra.mxu0 0.0
        %999 = vmatprep.subr.mxu0 0.0
        %1000 = vmatpush1.xpose.msra.mxu0 0.0
        %1001 = vmatprep.subr.mxu0 0.0
        %1002 = vmatpush1.xpose.msra.mxu0 0.0
        %1003 = vmatprep.subr.mxu0 0.0
        %1004 = vmatpush1.xpose.msra.mxu0 0.0
        %1005 = vmatprep.subr.mxu0 0.0
        %1006 = vmatpush1.xpose.msra.mxu0 0.0
        %1007 = vmatprep.subr.mxu0 0.0
        %1008 = vmatpush1.xpose.msra.mxu0 0.0
        %1009 = vmatprep.subr.mxu0 0.0
        %1010 = vmatpush1.xpose.msra.mxu0 0.0
        %1011 = vmatprep.subr.mxu0 0.0
        %1012 = vmatpush1.xpose.msra.mxu0 0.0
        %1013 = vmatprep.subr.mxu0 0.0
        %1014 = vmatpush1.xpose.msra.mxu0 0.0
        %1015 = vmatprep.subr.mxu0 0.0
        %1016 = vmatpush1.xpose.msra.mxu0 0.0
        %1017 = vmatprep.subr.mxu0 0.0
        %1018 = vmatpush1.xpose.msra.mxu0 0.0
        %1019 = vmatprep.subr.mxu0 0.0
        %1020 = vmatpush1.xpose.msra.mxu0 0.0
        %1021 = vmatprep.subr.mxu0 0.0
        %1022 = vmatpush1.xpose.msra.mxu0 0.0
        %1023 = vmatprep.subr.mxu0 0.0
        %1024 = vmatpush1.xpose.msra.mxu0 0.0
        %1025 = vmatprep.subr.mxu0 0.0
        %1026 = vmatpush1.xpose.msra.mxu0 0.0
        %1027 = vmatprep.mubr.f32.mxu0 0.0
        %1028 = vmatmul.mubr.f32.gmra.mrb[0].mxu0 %v959
        %v1029 = vpop.f32.mrb[0].mxu0
        %v1030 = vadd.f32 0.0, %v1029
        %v1031 = vpop.f32.mrb[0].mxu0
        %1032 = vdwg.mxu0
        %v1033 = vmul.f32 %v1030, 0.25
        %v1034 = vsel %vm698, %v1033, -inf
        %1035 = vmax.xlane.f32.xlu0 %v1034
        %v1036 = vpop.xlane.xlu0 %1035
        %v1037 = vsub.f32 %v1033, %v1036
        %v1038 = vmul.f32 %v1037, 1.442695
        %v1039 = vpow.pop %v1038
        %v1040 = vsel %vm698, %v1039, 0.0
        %1041 = vadd.xlane.f32.xlu0 %v1040
        %v1042 = vpop.xlane.xlu0 %1041
        %v1043 = vrcp.pop %v1042
        %v1044 = vmul.f32 %v1039, %v1043
        %s1045 = scalar_lea.vmem %s440, 16
        %1046 = vst.msk [vmem:[%s1045] sm:$0xff] %vm698, %v1044
        %1047 = vrot.lane.b32.xlu0 %v617, 32
        %v1048 = vpop.permute.xlu0 %1047
        %v1051 = vsel %vm698, %v1044, 0
        %1053 = vmatprep.subr.mxu0 0.0
        %1054 = vmatpush1.msra.mxu0 %v1048
        %1055 = vmatprep.subr.mxu0 0.0
        %1056 = vmatpush1.msra.mxu0 0.0
        %1057 = vmatprep.subr.mxu0 0.0
        %1058 = vmatpush1.msra.mxu0 0.0
        %1059 = vmatprep.subr.mxu0 0.0
        %1060 = vmatpush1.msra.mxu0 0.0
        %1061 = vmatprep.subr.mxu0 0.0
        %1062 = vmatpush1.msra.mxu0 0.0
        %1063 = vmatprep.subr.mxu0 0.0
        %1064 = vmatpush1.msra.mxu0 0.0
        %1065 = vmatprep.subr.mxu0 0.0
        %1066 = vmatpush1.msra.mxu0 0.0
        %1067 = vmatprep.subr.mxu0 0.0
        %1068 = vmatpush1.msra.mxu0 0.0
        %1069 = vmatprep.subr.mxu0 0.0
        %1070 = vmatpush1.msra.mxu0 0.0
        %1071 = vmatprep.subr.mxu0 0.0
        %1072 = vmatpush1.msra.mxu0 0.0
        %1073 = vmatprep.subr.mxu0 0.0
        %1074 = vmatpush1.msra.mxu0 0.0
        %1075 = vmatprep.subr.mxu0 0.0
        %1076 = vmatpush1.msra.mxu0 0.0
        %1077 = vmatprep.subr.mxu0 0.0
        %1078 = vmatpush1.msra.mxu0 0.0
        %1079 = vmatprep.subr.mxu0 0.0
        %1080 = vmatpush1.msra.mxu0 0.0
        %1081 = vmatprep.subr.mxu0 0.0
        %1082 = vmatpush1.msra.mxu0 0.0
        %1083 = vmatprep.subr.mxu0 0.0
        %1084 = vmatpush1.msra.mxu0 0.0
        %1085 = vmatprep.subr.mxu0 0.0
        %1086 = vmatpush1.msra.mxu0 0.0
        %1087 = vmatprep.subr.mxu0 0.0
        %1088 = vmatpush1.msra.mxu0 0.0
        %1089 = vmatprep.subr.mxu0 0.0
        %1090 = vmatpush1.msra.mxu0 0.0
        %1091 = vmatprep.subr.mxu0 0.0
        %1092 = vmatpush1.msra.mxu0 0.0
        %1093 = vmatprep.subr.mxu0 0.0
        %1094 = vmatpush1.msra.mxu0 0.0
        %1095 = vmatprep.subr.mxu0 0.0
        %1096 = vmatpush1.msra.mxu0 0.0
        %1097 = vmatprep.subr.mxu0 0.0
        %1098 = vmatpush1.msra.mxu0 0.0
        %1099 = vmatprep.subr.mxu0 0.0
        %1100 = vmatpush1.msra.mxu0 0.0
        %1101 = vmatprep.subr.mxu0 0.0
        %1102 = vmatpush1.msra.mxu0 0.0
        %1103 = vmatprep.subr.mxu0 0.0
        %1104 = vmatpush1.msra.mxu0 0.0
        %1105 = vmatprep.subr.mxu0 0.0
        %1106 = vmatpush1.msra.mxu0 0.0
        %1107 = vmatprep.subr.mxu0 0.0
        %1108 = vmatpush1.msra.mxu0 0.0
        %1109 = vmatprep.subr.mxu0 0.0
        %1110 = vmatpush1.msra.mxu0 0.0
        %1111 = vmatprep.subr.mxu0 0.0
        %1112 = vmatpush1.msra.mxu0 0.0
        %1113 = vmatprep.subr.mxu0 0.0
        %1114 = vmatpush1.msra.mxu0 0.0
        %1115 = vmatprep.subr.mxu0 0.0
        %1116 = vmatpush1.msra.mxu0 0.0
        %1117 = vmatprep.mubr.f32.mxu0 0.0
        %1118 = vmatmul.mubr.f32.gmra.mrb[0].mxu0 %v1051
        %v1119 = vpop.f32.mrb[0].mxu0
        %v1120 = vadd.f32 0.0, %v1119
        %v1121 = vpop.f32.mrb[0].mxu0
        %1122 = vdwg.mxu0
        %1123 = vrot.lane.b32.xlu0 %v529, 80
        %v1124 = vpop.permute.xlu0 %1123
        %1125 = vrot.lane.b32.xlu0 %v617, 80
        %v1126 = vpop.permute.xlu0 %1125
        %v1127 = vsel %vm620, %v1124, 0
        %v1129 = vsel %vm620, %v1126, 0
        %1131 = vmatprep.subr.mxu0 0.0
        %1132 = vmatpush1.xpose.msra.mxu0 %v1129
        %1133 = vmatprep.subr.mxu0 0.0
        %1134 = vmatpush1.xpose.msra.mxu0 0.0
        %1135 = vmatprep.subr.mxu0 0.0
        %1136 = vmatpush1.xpose.msra.mxu0 0.0
        %1137 = vmatprep.subr.mxu0 0.0
        %1138 = vmatpush1.xpose.msra.mxu0 0.0
        %1139 = vmatprep.subr.mxu0 0.0
        %1140 = vmatpush1.xpose.msra.mxu0 0.0
        %1141 = vmatprep.subr.mxu0 0.0
        %1142 = vmatpush1.xpose.msra.mxu0 0.0
        %1143 = vmatprep.subr.mxu0 0.0
        %1144 = vmatpush1.xpose.msra.mxu0 0.0
        %1145 = vmatprep.subr.mxu0 0.0
        %1146 = vmatpush1.xpose.msra.mxu0 0.0
        %1147 = vmatprep.subr.mxu0 0.0
        %1148 = vmatpush1.xpose.msra.mxu0 0.0
        %1149 = vmatprep.subr.mxu0 0.0
        %1150 = vmatpush1.xpose.msra.mxu0 0.0
        %1151 = vmatprep.subr.mxu0 0.0
        %1152 = vmatpush1.xpose.msra.mxu0 0.0
        %1153 = vmatprep.subr.mxu0 0.0
        %1154 = vmatpush1.xpose.msra.mxu0 0.0
        %1155 = vmatprep.subr.mxu0 0.0
        %1156 = vmatpush1.xpose.msra.mxu0 0.0
        %1157 = vmatprep.subr.mxu0 0.0
        %1158 = vmatpush1.xpose.msra.mxu0 0.0
        %1159 = vmatprep.subr.mxu0 0.0
        %1160 = vmatpush1.xpose.msra.mxu0 0.0
        %1161 = vmatprep.subr.mxu0 0.0
        %1162 = vmatpush1.xpose.msra.mxu0 0.0
        %1163 = vmatprep.subr.mxu0 0.0
        %1164 = vmatpush1.xpose.msra.mxu0 0.0
        %1165 = vmatprep.subr.mxu0 0.0
        %1166 = vmatpush1.xpose.msra.mxu0 0.0
        %1167 = vmatprep.subr.mxu0 0.0
        %1168 = vmatpush1.xpose.msra.mxu0 0.0
        %1169 = vmatprep.subr.mxu0 0.0
        %1170 = vmatpush1.xpose.msra.mxu0 0.0
        %1171 = vmatprep.subr.mxu0 0.0
        %1172 = vmatpush1.xpose.msra.mxu0 0.0
        %1173 = vmatprep.subr.mxu0 0.0
        %1174 = vmatpush1.xpose.msra.mxu0 0.0
        %1175 = vmatprep.subr.mxu0 0.0
        %1176 = vmatpush1.xpose.msra.mxu0 0.0
        %1177 = vmatprep.subr.mxu0 0.0
        %1178 = vmatpush1.xpose.msra.mxu0 0.0
        %1179 = vmatprep.subr.mxu0 0.0
        %1180 = vmatpush1.xpose.msra.mxu0 0.0
        %1181 = vmatprep.subr.mxu0 0.0
        %1182 = vmatpush1.xpose.msra.mxu0 0.0
        %1183 = vmatprep.subr.mxu0 0.0
        %1184 = vmatpush1.xpose.msra.mxu0 0.0
        %1185 = vmatprep.subr.mxu0 0.0
        %1186 = vmatpush1.xpose.msra.mxu0 0.0
        %1187 = vmatprep.subr.mxu0 0.0
        %1188 = vmatpush1.xpose.msra.mxu0 0.0
        %1189 = vmatprep.subr.mxu0 0.0
        %1190 = vmatpush1.xpose.msra.mxu0 0.0
        %1191 = vmatprep.subr.mxu0 0.0
        %1192 = vmatpush1.xpose.msra.mxu0 0.0
        %1193 = vmatprep.subr.mxu0 0.0
        %1194 = vmatpush1.xpose.msra.mxu0 0.0
        %1195 = vmatprep.mubr.f32.mxu0 0.0
        %1196 = vmatmul.mubr.f32.gmra.mrb[0].mxu0 %v1127
        %v1197 = vpop.f32.mrb[0].mxu0
        %v1198 = vadd.f32 0.0, %v1197
        %v1199 = vpop.f32.mrb[0].mxu0
        %1200 = vdwg.mxu0
        %v1201 = vmul.f32 %v1198, 0.25
        %v1202 = vsel %vm698, %v1201, -inf
        %1203 = vmax.xlane.f32.xlu0 %v1202
        %v1204 = vpop.xlane.xlu0 %1203
        %v1205 = vsub.f32 %v1201, %v1204
        %v1206 = vmul.f32 %v1205, 1.442695
        %v1207 = vpow.pop %v1206
        %v1208 = vsel %vm698, %v1207, 0.0
        %1209 = vadd.xlane.f32.xlu0 %v1208
        %v1210 = vpop.xlane.xlu0 %1209
        %v1211 = vrcp.pop %v1210
        %v1212 = vmul.f32 %v1207, %v1211
        %s1213 = scalar_lea.vmem %s440, 24
        %1214 = vst.msk [vmem:[%s1213] sm:$0xff] %vm698, %v1212
        %1215 = vrot.lane.b32.xlu0 %v617, 16
        %v1216 = vpop.permute.xlu0 %1215
        %v1219 = vsel %vm698, %v1212, 0
        %1221 = vmatprep.subr.mxu0 0.0
        %1222 = vmatpush1.msra.mxu0 %v1216
        %1223 = vmatprep.subr.mxu0 0.0
        %1224 = vmatpush1.msra.mxu0 0.0
        %1225 = vmatprep.subr.mxu0 0.0
        %1226 = vmatpush1.msra.mxu0 0.0
        %1227 = vmatprep.subr.mxu0 0.0
        %1228 = vmatpush1.msra.mxu0 0.0
        %1229 = vmatprep.subr.mxu0 0.0
        %1230 = vmatpush1.msra.mxu0 0.0
        %1231 = vmatprep.subr.mxu0 0.0
        %1232 = vmatpush1.msra.mxu0 0.0
        %1233 = vmatprep.subr.mxu0 0.0
        %1234 = vmatpush1.msra.mxu0 0.0
        %1235 = vmatprep.subr.mxu0 0.0
        %1236 = vmatpush1.msra.mxu0 0.0
        %1237 = vmatprep.subr.mxu0 0.0
        %1238 = vmatpush1.msra.mxu0 0.0
        %1239 = vmatprep.subr.mxu0 0.0
        %1240 = vmatpush1.msra.mxu0 0.0
        %1241 = vmatprep.subr.mxu0 0.0
        %1242 = vmatpush1.msra.mxu0 0.0
        %1243 = vmatprep.subr.mxu0 0.0
        %1244 = vmatpush1.msra.mxu0 0.0
        %1245 = vmatprep.subr.mxu0 0.0
        %1246 = vmatpush1.msra.mxu0 0.0
        %1247 = vmatprep.subr.mxu0 0.0
        %1248 = vmatpush1.msra.mxu0 0.0
        %1249 = vmatprep.subr.mxu0 0.0
        %1250 = vmatpush1.msra.mxu0 0.0
        %1251 = vmatprep.subr.mxu0 0.0
        %1252 = vmatpush1.msra.mxu0 0.0
        %1253 = vmatprep.subr.mxu0 0.0
        %1254 = vmatpush1.msra.mxu0 0.0
        %1255 = vmatprep.subr.mxu0 0.0
        %1256 = vmatpush1.msra.mxu0 0.0
        %1257 = vmatprep.subr.mxu0 0.0
        %1258 = vmatpush1.msra.mxu0 0.0
        %1259 = vmatprep.subr.mxu0 0.0
        %1260 = vmatpush1.msra.mxu0 0.0
        %1261 = vmatprep.subr.mxu0 0.0
        %1262 = vmatpush1.msra.mxu0 0.0
        %1263 = vmatprep.subr.mxu0 0.0
        %1264 = vmatpush1.msra.mxu0 0.0
        %1265 = vmatprep.subr.mxu0 0.0
        %1266 = vmatpush1.msra.mxu0 0.0
        %1267 = vmatprep.subr.mxu0 0.0
        %1268 = vmatpush1.msra.mxu0 0.0
        %1269 = vmatprep.subr.mxu0 0.0
        %1270 = vmatpush1.msra.mxu0 0.0
        %1271 = vmatprep.subr.mxu0 0.0
        %1272 = vmatpush1.msra.mxu0 0.0
        %1273 = vmatprep.subr.mxu0 0.0
        %1274 = vmatpush1.msra.mxu0 0.0
        %1275 = vmatprep.subr.mxu0 0.0
        %1276 = vmatpush1.msra.mxu0 0.0
        %1277 = vmatprep.subr.mxu0 0.0
        %1278 = vmatpush1.msra.mxu0 0.0
        %1279 = vmatprep.subr.mxu0 0.0
        %1280 = vmatpush1.msra.mxu0 0.0
        %1281 = vmatprep.subr.mxu0 0.0
        %1282 = vmatpush1.msra.mxu0 0.0
        %1283 = vmatprep.subr.mxu0 0.0
        %1284 = vmatpush1.msra.mxu0 0.0
        %1285 = vmatprep.mubr.f32.mxu0 0.0
        %1286 = vmatmul.mubr.f32.gmra.mrb[0].mxu0 %v1219
        %v1287 = vpop.f32.mrb[0].mxu0
        %v1288 = vadd.f32 0.0, %v1287
        %v1289 = vpop.f32.mrb[0].mxu0
        %1290 = vdwg.mxu0
        %1292 = vrot.lane.b32.xlu0 %v952, 16
        %v1293 = vpop.permute.xlu0 %1292
        %1296 = vrot.lane.b32.xlu0 %v1120, 32
        %v1297 = vpop.permute.xlu0 %1296
        %1300 = vrot.lane.b32.xlu0 %v1288, 48
        %v1301 = vpop.permute.xlu0 %1300
        %v1303 = vsel %vm620, %v784, %v1293
        %vm1304 = vcmask 261120
        %v1305 = vsel %vm1304, %v1303, %v1297
        %vm1306 = vcmask 392192
        %v1307 = vsel %vm1306, %v1305, %v1301
        %v1308 = vld [vmem:[#allocation10] sm:$0xff]
        %v1309 = vld [vmem:[#allocation10 + $0x8] sm:$0xff]
        %v1310 = vld [vmem:[#allocation10 + $0x10] sm:$0xff]
        %v1311 = vld [vmem:[#allocation10 + $0x18] sm:$0xff]
        %v1312 = vld [vmem:[#allocation10 + $0x20] sm:$0xff]
        %v1313 = vld [vmem:[#allocation10 + $0x28] sm:$0xff]
        %v1314 = vld [vmem:[#allocation10 + $0x30] sm:$0xff]
        %v1315 = vld [vmem:[#allocation10 + $0x38] sm:$0xff]
        %v1316 = vld [vmem:[%s7] sm:$0x1]
        %v1318 = vlaneseq
        %v1319 = vshrl.u32 %v1318, 7
        %v1320 = vsub.s32 0, %v1319
        %v1321 = vrot.slane %v1316, %v1320
        %v1324 = vsel %vm458, %v1307, 0
        %1326 = vmatprep.subr.mxu0 0.0
        %1327 = vmatpush1.msra.mxu0 %v1308
        %1328 = vmatprep.subr.mxu0 0.0
        %1329 = vmatpush1.msra.mxu0 %v1309
        %1330 = vmatprep.subr.mxu0 0.0
        %1331 = vmatpush1.msra.mxu0 %v1310
        %1332 = vmatprep.subr.mxu0 0.0
        %1333 = vmatpush1.msra.mxu0 %v1311
        %1334 = vmatprep.subr.mxu0 0.0
        %1335 = vmatpush1.msra.mxu0 %v1312
        %1336 = vmatprep.subr.mxu0 0.0
        %1337 = vmatpush1.msra.mxu0 %v1313
        %1338 = vmatprep.subr.mxu0 0.0
        %1339 = vmatpush1.msra.mxu0 %v1314
        %1340 = vmatprep.subr.mxu0 0.0
        %1341 = vmatpush1.msra.mxu0 %v1315
        %1342 = vmatprep.subr.mxu0 0.0
        %1343 = vmatpush1.msra.mxu0 0.0
        %1344 = vmatprep.subr.mxu0 0.0
        %1345 = vmatpush1.msra.mxu0 0.0
        %1346 = vmatprep.subr.mxu0 0.0
        %1347 = vmatpush1.msra.mxu0 0.0
        %1348 = vmatprep.subr.mxu0 0.0
        %1349 = vmatpush1.msra.mxu0 0.0
        %1350 = vmatprep.subr.mxu0 0.0
        %1351 = vmatpush1.msra.mxu0 0.0
        %1352 = vmatprep.subr.mxu0 0.0
        %1353 = vmatpush1.msra.mxu0 0.0
        %1354 = vmatprep.subr.mxu0 0.0
        %1355 = vmatpush1.msra.mxu0 0.0
        %1356 = vmatprep.subr.mxu0 0.0
        %1357 = vmatpush1.msra.mxu0 0.0
        %1358 = vmatprep.subr.mxu0 0.0
        %1359 = vmatpush1.msra.mxu0 0.0
        %1360 = vmatprep.subr.mxu0 0.0
        %1361 = vmatpush1.msra.mxu0 0.0
        %1362 = vmatprep.subr.mxu0 0.0
        %1363 = vmatpush1.msra.mxu0 0.0
        %1364 = vmatprep.subr.mxu0 0.0
        %1365 = vmatpush1.msra.mxu0 0.0
        %1366 = vmatprep.subr.mxu0 0.0
        %1367 = vmatpush1.msra.mxu0 0.0
        %1368 = vmatprep.subr.mxu0 0.0
        %1369 = vmatpush1.msra.mxu0 0.0
        %1370 = vmatprep.subr.mxu0 0.0
        %1371 = vmatpush1.msra.mxu0 0.0
        %1372 = vmatprep.subr.mxu0 0.0
        %1373 = vmatpush1.msra.mxu0 0.0
        %1374 = vmatprep.subr.mxu0 0.0
        %1375 = vmatpush1.msra.mxu0 0.0
        %1376 = vmatprep.subr.mxu0 0.0
        %1377 = vmatpush1.msra.mxu0 0.0
        %1378 = vmatprep.subr.mxu0 0.0
        %1379 = vmatpush1.msra.mxu0 0.0
        %1380 = vmatprep.subr.mxu0 0.0
        %1381 = vmatpush1.msra.mxu0 0.0
        %1382 = vmatprep.subr.mxu0 0.0
        %1383 = vmatpush1.msra.mxu0 0.0
        %1384 = vmatprep.subr.mxu0 0.0
        %1385 = vmatpush1.msra.mxu0 0.0
        %1386 = vmatprep.subr.mxu0 0.0
        %1387 = vmatpush1.msra.mxu0 0.0
        %1388 = vmatprep.subr.mxu0 0.0
        %1389 = vmatpush1.msra.mxu0 0.0
        %1390 = vmatprep.mubr.f32.mxu0 0.0
        %1391 = vmatmul.mubr.f32.gmra.mrb[0].mxu0 %v1324
        %v1392 = vpop.f32.mrb[0].mxu0
        %v1393 = vadd.f32 %v1321, %v1392
        %v1394 = vpop.f32.mrb[0].mxu0
        %1395 = vdwg.mxu0
        %1396 = vst.msk [vmem:[%s428] sm:$0xff] %vm458, %v1393
        %s1397 = sand.u32 %s217, 1
        %s1398 = scalar_lea.sflag [#allocation4], %s1397
        %s1399 = sand.u32 %s217, 1
        %s1400 = smul.addr %s1399, 8
        %s1401 = scalar_lea.vmem [#allocation11], %s1400
        %p1402 = scmp.lt.s32.totalorder %s31, 1
        %s1403 = scalar_select %p1402, %s31, 1
        %s1404 = smul.addr %s1403, 4
        %s1405 = smul.addr %s1404, 8
        %s1406 = scalar_lea.vmem %s9, %s1405
        // Predicated region
        $region73: #{multi_head_attention.1} parent=51 // pred_check
          %p1407 = pneg %p227
        $region74: #{multi_head_attention.1} parent=51 // pred_check_branch
          %1409 = sbr.rel (%p1407) target = $region76
        $region75: #{multi_head_attention.1} parent=51 // pred_region
          %s1411 = ssub.s32 128, 128
          %1412 = vsyncadd %s1398, %s1411
          %s1413 = smul.addr %s31, 128
          %s1414 = scalar_lea.hbm %s8, %s1413
          %s1416 = sshll.u32 %s1401, 4
          %s1417 = int_to_ptr.vmem [resolvable:$true] %s1416
          %1419 = dma.vmem_to_hbm [thread:$0]  %s1417, 128, %s1414, %s1398
        $region76: #{multi_head_attention.1} parent=51 // pred_fallthru
          _
        // Predicated region
        $region77: #{multi_head_attention.1} parent=51 // pred_check
          %p1420 = pneg %p253
        $region78: #{multi_head_attention.1} parent=51 // pred_check_branch
          %1422 = sbr.rel (%p1420) target = $region80
        $region79: #{multi_head_attention.1} parent=51 // pred_region
          _
        $region80: #{multi_head_attention.1} parent=51 // pred_fallthru
          _
      $region52: #{multi_head_attention.1} parent=5 // pred_fallthru
        _
      %p1423 = scmp.le.s32.totalorder 2, %s26
      // Predicated region
      $region81: #{multi_head_attention.1} parent=5 // pred_check
        %p1424 = pneg %p1423
      $region82: #{multi_head_attention.1} parent=5 // pred_check_branch
        %1426 = sbr.rel (%p1424) target = $region84
      $region83: #{multi_head_attention.1} parent=5 // pred_region
        %s1427 = ssub.s32 %s26, 2
        // Predicated region
        $region85: #{multi_head_attention.1} parent=83 // pred_check
          %p1428 = pneg %p233
        $region86: #{multi_head_attention.1} parent=83 // pred_check_branch
          %1430 = sbr.rel (%p1428) target = $region88
        $region87: #{multi_head_attention.1} parent=83 // pred_region
          %s1431 = sand.u32 %s218, 1
          %s1432 = scalar_lea.sflag [#allocation4], %s1431
          %s1433 = sand.u32 %s218, 1
          %s1434 = smul.addr %s1433, 8
          %s1435 = scalar_lea.vmem [#allocation11], %s1434
          %1436 = dma.done %s1432, 128
        $region88: #{multi_head_attention.1} parent=83 // pred_fallthru
          _
        // Predicated region
        $region89: #{multi_head_attention.1} parent=83 // pred_check
          %p1437 = pneg %p259
        $region90: #{multi_head_attention.1} parent=83 // pred_check_branch
          %1439 = sbr.rel (%p1437) target = $region92
        $region91: #{multi_head_attention.1} parent=83 // pred_region
          %p1440 = scmp.lt.s32.totalorder %s32, 1
          %s1441 = scalar_select %p1440, %s32, 1
          %s1442 = smul.addr %s1441, 4
          %s1443 = smul.addr %s1442, 8
          %s1444 = scalar_lea.vmem %s9, %s1443
        $region92: #{multi_head_attention.1} parent=83 // pred_fallthru
          _
      $region84: #{multi_head_attention.1} parent=5 // pred_fallthru
        _
    $region6: #{multi_head_attention.1} parent=1 // loop_footer
      %s30 = sadd.s32 1, %s26
    $region7: #{multi_head_attention.1} parent=1 // loop_footer_branch
      %25 = sbr.rel target = $region3
    $region8: #{multi_head_attention.1} parent=1 // loop_exit
      _
    %1445 = vsyncpa [#allocation3], 1
    %s1446 = scalar_lea.sflag [#allocation3], 1
    %1447 = vsyncpa %s1446, 1
    %1448 = vsyncpa [#allocation6], 1
    %s1449 = scalar_lea.sflag [#allocation6], 1
    %1450 = vsyncpa %s1449, 1
    %1451 = vsyncpa [#allocation9], 1
    %1452 = vsyncpa [#allocation4], 1
    %s1453 = scalar_lea.sflag [#allocation4], 1
    %1454 = vsyncpa %s1453, 1

</llo_original>
